<compile_context>
chip_gen: v7x
topology: tpu7x:2x2x1
jax: 0.10.0
libtpu: 0.0.40
codegen_flags: <defaults>
</compile_context>

<pallas_src>
import functools

import jax
import jax.numpy as jnp
from jax.experimental import pallas as pl
from jax.experimental.pallas import tpu as pltpu


def _round_up(x, m):
    return ((x + m - 1) // m) * m


def _cdiv(a, b):
    return -(-a // b)


def _attention_kernel(entropy, mode,
                      last_ref, states_ref, ies_ref,
                      wq_ref, bq_ref, wkT_ref, bk_ref, wv_ref, bv_ref, we_ref,
                      ctx_ref, attn_ref):
    # Per grid step (one batch tile of TB rows):
    #   last_ref:   (TB, H)      f32
    #   states_ref: (TB, M, H)   f32
    #   ies_ref:    (TB, M)      f32
    #   wq_ref:     (H, H)       MXU dtype (bf16 by default)
    #   bq_ref:     (1, H)       f32
    #   wkT_ref:    (H, H)       MXU dtype   (W_K transposed)
    #   bk_ref:     (1, H)       f32
    #   wv_ref:     (H, H_pad)   MXU dtype   (zero-padded to lane-dense width)
    #   bv_ref:     (1, H_pad)   f32         (zero-padded)
    #   we_ref:     (1, M)       f32
    #   ctx_ref:    (TB, H_pad)  output
    #   attn_ref:   (TB, M_pad)  output
    TB, M, H = states_ref.shape
    H_pad = ctx_ref.shape[-1]
    M_pad = attn_ref.shape[-1]
    mxu_dtype = wq_ref.dtype

    # Q projection (MXU, f32 accumulation).
    q = jnp.dot(last_ref[...].astype(mxu_dtype), wq_ref[...],
                preferred_element_type=jnp.float32) + bq_ref[...]          # (TB, H)

    # Algebraic refactor of the K projection:
    #   scores[b,m] = <Q[b], states[b,m] @ Wk + bk>
    #               = <states[b,m], Q[b] @ Wk^T> + <Q[b], bk>
    # One (TB,H)@(H,H) matmul instead of projecting all M window states.
    qk = jnp.dot(q.astype(mxu_dtype), wkT_ref[...],
                 preferred_element_type=jnp.float32)                       # (TB, H)
    qbk = jnp.sum(q * bk_ref[...], axis=-1, keepdims=True)                 # (TB, 1)

    states = states_ref[...]                                               # (TB, M, H) f32
    scale = jnp.float32(1.0 / (H ** 0.5))
    scores = (jnp.sum(states * qk[:, None, :], axis=-1) + qbk) * scale     # (TB, M)

    if entropy:
        ie = ies_ref[...]                                                  # (TB, M)
        if mode == 'SE':
            m_t = jnp.tanh(we_ref[...] * ie)
        else:  # 'IE'
            m_t = jnp.exp(-we_ref[...] * ie)
        scores = scores * m_t

    # Softmax over M (f32 VPU/EUP math; denominator reciprocal on the EUP).
    smax = jnp.max(scores, axis=-1, keepdims=True)
    e = jnp.exp(scores - smax)                                             # (TB, M) unnormalized
    r = pl.reciprocal(jnp.sum(e, axis=-1, keepdims=True), approx=True)     # (TB, 1)

    # Attention weights, zero-padded to a lane-dense (>=128) width so the
    # store is an unmasked full-vreg vst.
    attn = e * r
    if M_pad > M:
        attn = jnp.concatenate(
            [attn, jnp.zeros((TB, M_pad - M), jnp.float32)], axis=-1)
    attn_ref[...] = attn.astype(attn_ref.dtype)

    # Algebraic refactor of the V projection:
    #   ctx[b] = sum_m attn[b,m] * (states[b,m] @ Wv + bv)
    #          = ((sum_m e[b,m] * states[b,m]) @ Wv) * r[b] + bv
    # (sum_m attn == 1 exactly, so bv is added exactly once and is not scaled
    #  by the approximate reciprocal.)  e is reused for both softmax and the
    #  weighted state sum.  Padded Wv/bv columns are zero -> padded ctx lanes
    #  are exactly zero.
    weighted = jnp.sum(states * e[:, :, None], axis=1)                     # (TB, H)
    ctx = jnp.dot(weighted.astype(mxu_dtype), wv_ref[...],
                  preferred_element_type=jnp.float32) * r + bv_ref[...]    # (TB, H_pad)
    ctx_ref[...] = ctx.astype(ctx_ref.dtype)


def prepare_attention_params(params, m_window, *, use_bf16_mxu=True):
    """One-time weight preprocessing (hoisted out of the per-call hot path).

    Transposes W_K, lane-pads W_V/b_V to a >=128-wide output slab, reshapes
    biases, and pre-casts MXU operands to bf16.
    """
    H = params['wq'].shape[0]
    H_pad = _round_up(H, 128)
    mxu_dtype = jnp.bfloat16 if use_bf16_mxu else jnp.float32
    wv_pad = jnp.pad(params['wv'], ((0, 0), (0, H_pad - H)))
    bv_pad = jnp.pad(params['bv'], (0, H_pad - H))
    return {
        'wq': params['wq'].astype(mxu_dtype),                    # (H, H)
        'wkT': params['wk'].T.astype(mxu_dtype),                 # (H, H)
        'wv': wv_pad.astype(mxu_dtype),                          # (H, H_pad)
        'bq': params['bq'].reshape(1, H).astype(jnp.float32),
        'bk': params['bk'].reshape(1, H).astype(jnp.float32),
        'bv': bv_pad.reshape(1, H_pad).astype(jnp.float32),
        'we': params['we'].reshape(1, m_window).astype(jnp.float32),
        'H': H,
        'H_pad': H_pad,
    }


def attention_layer(last_state, all_states, IEs, params, *,
                    entropy=True, mode='IE', block_b=256, use_bf16_mxu=True):
    """Pallas implementation of AttentionLayer.forward.

    `params` may be raw parameters or the output of prepare_attention_params
    (preferred: prepare once, reuse per call).
    Returns (context (B, H), attention_weights (B, M)).
    """
    B, H = last_state.shape
    _, M, _ = all_states.shape

    prep = params if 'wkT' in params else prepare_attention_params(
        params, M, use_bf16_mxu=use_bf16_mxu)
    H_pad = prep['H_pad']
    M_pad = _round_up(M, 128)

    # IEs may be None when entropy=False (matches the PyTorch signature).
    ies = IEs[..., 0] if IEs is not None else jnp.zeros((B, M), last_state.dtype)

    # ---- batch tile size (no jnp.pad of all_states: ragged tail blocks are
    # handled by Pallas' masked partial-block loads/stores). ----
    if B <= 8:
        TB = B                                      # full-dim block, single step
    else:
        # Multiple of 8 (sublane rule); >=2 grid steps so v7x's 2nd TC is used.
        TB = min(_round_up(block_b, 8), _round_up(_cdiv(B, 2), 8))

    weights = (prep['wq'], prep['bq'], prep['wkT'], prep['bk'],
               prep['wv'], prep['bv'], prep['we'])
    w_bytes = sum(int(w.size) * w.dtype.itemsize for w in weights)

    def footprint(tb):   # conservative: everything double-buffered
        act = 4 * tb * (H + M * H + M + H_pad + M_pad)
        return 2 * act + 2 * w_bytes

    budget = 40 << 20                               # headroom vs v7x's 64 MiB VMEM
    while TB > 8 and footprint(TB) > budget:
        TB = max(8, _round_up(TB // 2, 8))
    vmem_limit = int(min(64 << 20, max(32 << 20, (footprint(TB) * 3) // 2)))

    grid = (_cdiv(B, TB),)
    kernel = functools.partial(_attention_kernel, entropy, mode)
    out_shape = (jax.ShapeDtypeStruct((B, H_pad), last_state.dtype),
                 jax.ShapeDtypeStruct((B, M_pad), last_state.dtype))
    cparams = pltpu.CompilerParams(dimension_semantics=("parallel",),
                                   vmem_limit_bytes=vmem_limit)

    def build(single_buffer_weights):
        if single_buffer_weights:
            # Constant-index weights never change across the grid: a single
            # buffer halves their VMEM footprint.
            def wspec(shape):
                return pl.BlockSpec(shape, lambda b: (0, 0),
                                    pipeline_mode=pl.Buffered(1))
        else:
            def wspec(shape):
                return pl.BlockSpec(shape, lambda b: (0, 0))

        in_specs = [
            pl.BlockSpec((TB, H), lambda b: (b, 0)),            # last_state
            pl.BlockSpec((TB, M, H), lambda b: (b, 0, 0)),      # all_states
            pl.BlockSpec((TB, M), lambda b: (b, 0)),            # IEs
            wspec((H, H)), wspec((1, H)),                       # W_Q, b_Q
            wspec((H, H)), wspec((1, H)),                       # W_K^T, b_K
            wspec((H, H_pad)), wspec((1, H_pad)),               # W_V (padded), b_V
            wspec((1, M)),                                      # W_e
        ]
        out_specs = (pl.BlockSpec((TB, H_pad), lambda b: (b, 0)),   # context
                     pl.BlockSpec((TB, M_pad), lambda b: (b, 0)))   # attention
        return pl.pallas_call(kernel, out_shape=out_shape, grid=grid,
                              in_specs=in_specs, out_specs=out_specs,
                              compiler_params=cparams)

    args = (last_state, all_states, ies) + weights
    try:
        ctx_p, attn_p = build(True)(*args)
    except Exception:
        # pl.Buffered(1) single-buffering unsupported on this jax/Mosaic
        # version -> fall back to default double-buffered weight specs.
        ctx_p, attn_p = build(False)(*args)

    return ctx_p[:, :H], attn_p[:, :M]


def attention_layer_ref(last_state, all_states, IEs, params, *,
                        entropy=True, mode='IE'):
    """Pure-JAX reference matching the PyTorch forward semantics."""
    Q = last_state @ params['wq'] + params['bq']                  # (B, H)
    K = all_states @ params['wk'] + params['bk']                  # (B, M, H)
    V = all_states @ params['wv'] + params['bv']                  # (B, M, H)
    scores = jnp.einsum('bh,bmh->bm', Q, K) / (K.shape[-1] ** 0.5)
    if entropy:
        ie = IEs[..., 0]                                          # (B, M)
        if mode == 'SE':
            m_t = jnp.tanh(params['we'][None, :] * ie)
        else:
            m_t = jnp.exp(-params['we'][None, :] * ie)
        scores = scores * m_t
    attn = jax.nn.softmax(scores, axis=-1)
    ctx = jnp.einsum('bm,bmh->bh', attn, V)
    return ctx, attn


if __name__ == "__main__":
    B, M, H = 2, 8, 32   # batch, M_WINDOW, hidden_size

    key = jax.random.PRNGKey(0)
    keys = jax.random.split(key, 10)

    # Deterministic synthetic parameters (shapes from the module's __init__).
    # Linear weights stored as (H_in, H_out) = PyTorch weight.T
    params = {
        'wq': 0.1 * jax.random.normal(keys[0], (H, H), jnp.float32),
        'bq': 0.1 * jax.random.normal(keys[1], (H,), jnp.float32),
        'wk': 0.1 * jax.random.normal(keys[2], (H, H), jnp.float32),
        'bk': 0.1 * jax.random.normal(keys[3], (H,), jnp.float32),
        'wv': 0.1 * jax.random.normal(keys[4], (H, H), jnp.float32),
        'bv': 0.1 * jax.random.normal(keys[5], (H,), jnp.float32),
        # W_e ~ Normal(mean=1, std=0.01)
        'we': 1.0 + 0.01 * jax.random.normal(keys[6], (M,), jnp.float32),
    }

    last_state = jax.random.normal(keys[7], (B, H), jnp.float32)
    all_states = jax.random.normal(keys[8], (B, M, H), jnp.float32)
    IEs = jax.random.uniform(keys[9], (B, M, 1), jnp.float32)

    # bf16 MXU path tolerated at 1e-2 (bf16 operands + EUP approx reciprocal);
    # f32 MXU path checked tighter at 3e-3 (approx reciprocal only).
    configs = ((True, 1e-2), (False, 3e-3))

    for use_bf16, tol in configs:
        prep = prepare_attention_params(params, M, use_bf16_mxu=use_bf16)
        for entropy, mode in ((True, 'IE'), (True, 'SE'), (False, 'IE')):
            ctx, attn = attention_layer(last_state, all_states, IEs, prep,
                                        entropy=entropy, mode=mode)
            jax.block_until_ready((ctx, attn))
            ctx_ref, attn_ref = attention_layer_ref(
                last_state, all_states, IEs, params, entropy=entropy, mode=mode)
            assert ctx.shape == (B, H) and attn.shape == (B, M)
            if not (jnp.allclose(ctx, ctx_ref, rtol=tol, atol=tol)
                    and jnp.allclose(attn, attn_ref, rtol=tol, atol=tol)):
                raise AssertionError(
                    "Pallas kernel output mismatch vs. JAX reference "
                    f"(bf16={use_bf16}, entropy={entropy}, mode={mode})")

    print("KERNEL_OK")
</pallas_src>

<mosaic_0001>
module attributes {stable_mosaic.version = 11 : i64} {
  func.func @_attention_kernel(%arg0: i32, %arg1: memref<2x32xf32, #tpu.memory_space<vmem>>, %arg2: memref<2x8x32xf32, #tpu.memory_space<vmem>>, %arg3: memref<2x8xf32, #tpu.memory_space<vmem>>, %arg4: memref<32x32xbf16, #tpu.memory_space<vmem>>, %arg5: memref<1x32xf32, #tpu.memory_space<vmem>>, %arg6: memref<32x32xbf16, #tpu.memory_space<vmem>>, %arg7: memref<1x32xf32, #tpu.memory_space<vmem>>, %arg8: memref<32x128xbf16, #tpu.memory_space<vmem>>, %arg9: memref<1x128xf32, #tpu.memory_space<vmem>>, %arg10: memref<1x8xf32, #tpu.memory_space<vmem>>, %arg11: memref<2x128xf32, #tpu.memory_space<vmem>>, %arg12: memref<2x128xf32, #tpu.memory_space<vmem>>) attributes {dimension_semantics = [#tpu.dimension_semantics<parallel>], iteration_bounds = array<i64: 1>, scalar_prefetch = 0 : i64, scratch_operands = 0 : i64, tpu.core_type = #tpu.core_type<tc>, window_params = [{transform_indices = @transform_0, window_bounds = array<i64: 2, 32>}, {transform_indices = @transform_1, window_bounds = array<i64: 2, 8, 32>}, {transform_indices = @transform_2, window_bounds = array<i64: 2, 8>}, {pipeline_mode = #tpu.pipeline_mode<synchronous>, transform_indices = @transform_3, window_bounds = array<i64: 32, 32>}, {pipeline_mode = #tpu.pipeline_mode<synchronous>, transform_indices = @transform_4, window_bounds = array<i64: 1, 32>}, {pipeline_mode = #tpu.pipeline_mode<synchronous>, transform_indices = @transform_5, window_bounds = array<i64: 32, 32>}, {pipeline_mode = #tpu.pipeline_mode<synchronous>, transform_indices = @transform_6, window_bounds = array<i64: 1, 32>}, {pipeline_mode = #tpu.pipeline_mode<synchronous>, transform_indices = @transform_7, window_bounds = array<i64: 32, 128>}, {pipeline_mode = #tpu.pipeline_mode<synchronous>, transform_indices = @transform_8, window_bounds = array<i64: 1, 128>}, {pipeline_mode = #tpu.pipeline_mode<synchronous>, transform_indices = @transform_9, window_bounds = array<i64: 1, 8>}, {transform_indices = @transform_10, window_bounds = array<i64: 2, 128>}, {transform_indices = @transform_11, window_bounds = array<i64: 2, 128>}]} {
    %c0 = arith.constant 0 : index
    %c0_0 = arith.constant 0 : index
    %0 = vector.load %arg1[%c0, %c0_0] : memref<2x32xf32, #tpu.memory_space<vmem>>, vector<2x32xf32>
    %1 = arith.truncf %0 : vector<2x32xf32> to vector<2x32xbf16>
    %c0_1 = arith.constant 0 : index
    %c0_2 = arith.constant 0 : index
    %2 = vector.load %arg4[%c0_1, %c0_2] : memref<32x32xbf16, #tpu.memory_space<vmem>>, vector<32x32xbf16>
    %cst = arith.constant dense<0.000000e+00> : vector<2x32xf32>
    %3 = tpu.matmul %1, %2, %cst {dimension_numbers = #tpu.dot_dimension_numbers<[1], [0], [0], [1], [0, 0, 1, 1], [], []>} : vector<2x32xbf16>, vector<32x32xbf16>, vector<2x32xf32> -> vector<2x32xf32>
    %c0_3 = arith.constant 0 : index
    %c0_4 = arith.constant 0 : index
    %4 = vector.load %arg5[%c0_3, %c0_4] : memref<1x32xf32, #tpu.memory_space<vmem>>, vector<1x32xf32>
    %5 = vector.broadcast %4 : vector<1x32xf32> to vector<2x32xf32>
    %6 = arith.addf %3, %5 : vector<2x32xf32>
    %7 = arith.truncf %6 : vector<2x32xf32> to vector<2x32xbf16>
    %c0_5 = arith.constant 0 : index
    %c0_6 = arith.constant 0 : index
    %8 = vector.load %arg6[%c0_5, %c0_6] : memref<32x32xbf16, #tpu.memory_space<vmem>>, vector<32x32xbf16>
    %cst_7 = arith.constant dense<0.000000e+00> : vector<2x32xf32>
    %9 = tpu.matmul %7, %8, %cst_7 {dimension_numbers = #tpu.dot_dimension_numbers<[1], [0], [0], [1], [0, 0, 1, 1], [], []>} : vector<2x32xbf16>, vector<32x32xbf16>, vector<2x32xf32> -> vector<2x32xf32>
    %c0_8 = arith.constant 0 : index
    %c0_9 = arith.constant 0 : index
    %10 = vector.load %arg7[%c0_8, %c0_9] : memref<1x32xf32, #tpu.memory_space<vmem>>, vector<1x32xf32>
    %11 = vector.broadcast %10 : vector<1x32xf32> to vector<2x32xf32>
    %12 = arith.mulf %6, %11 : vector<2x32xf32>
    %cst_10 = arith.constant dense<0.000000e+00> : vector<2xf32>
    %13 = vector.multi_reduction <add>, %12, %cst_10 [1] : vector<2x32xf32> to vector<2xf32>
    %14 = vector.shape_cast %13 : vector<2xf32> to vector<2x1xf32>
    %c0_11 = arith.constant 0 : index
    %c0_12 = arith.constant 0 : index
    %c0_13 = arith.constant 0 : index
    %15 = vector.load %arg2[%c0_11, %c0_12, %c0_13] : memref<2x8x32xf32, #tpu.memory_space<vmem>>, vector<2x8x32xf32>
    %16 = vector.shape_cast %9 : vector<2x32xf32> to vector<2x1x32xf32>
    %17 = vector.broadcast %16 : vector<2x1x32xf32> to vector<2x8x32xf32>
    %18 = arith.mulf %15, %17 : vector<2x8x32xf32>
    %cst_14 = arith.constant dense<0.000000e+00> : vector<2x8xf32>
    %19 = vector.multi_reduction <add>, %18, %cst_14 [2] : vector<2x8x32xf32> to vector<2x8xf32>
    %20 = vector.broadcast %14 : vector<2x1xf32> to vector<2x8xf32>
    %21 = arith.addf %19, %20 : vector<2x8xf32>
    %cst_15 = arith.constant 0.176776692 : f32
    %22 = vector.broadcast %cst_15 : f32 to vector<2x8xf32>
    %23 = arith.mulf %21, %22 : vector<2x8xf32>
    %c0_16 = arith.constant 0 : index
    %c0_17 = arith.constant 0 : index
    %24 = vector.load %arg3[%c0_16, %c0_17] : memref<2x8xf32, #tpu.memory_space<vmem>>, vector<2x8xf32>
    %c0_18 = arith.constant 0 : index
    %c0_19 = arith.constant 0 : index
    %25 = vector.load %arg10[%c0_18, %c0_19] : memref<1x8xf32, #tpu.memory_space<vmem>>, vector<1x8xf32>
    %cst_20 = arith.constant 0.000000e+00 : f32
    %26 = vector.broadcast %cst_20 : f32 to vector<1x8xf32>
    %27 = arith.subf %26, %25 : vector<1x8xf32>
    %28 = vector.broadcast %27 : vector<1x8xf32> to vector<2x8xf32>
    %29 = arith.mulf %28, %24 : vector<2x8xf32>
    %30 = math.exp %29 : vector<2x8xf32>
    %31 = arith.mulf %23, %30 : vector<2x8xf32>
    %cst_21 = arith.constant dense<0xFF800000> : vector<2xf32>
    %32 = vector.multi_reduction <maximumf>, %31, %cst_21 [1] : vector<2x8xf32> to vector<2xf32>
    %33 = vector.shape_cast %32 : vector<2xf32> to vector<2x1xf32>
    %34 = vector.broadcast %33 : vector<2x1xf32> to vector<2x8xf32>
    %35 = arith.subf %31, %34 : vector<2x8xf32>
    %36 = math.exp %35 : vector<2x8xf32>
    %cst_22 = arith.constant dense<0.000000e+00> : vector<2xf32>
    %37 = vector.multi_reduction <add>, %36, %cst_22 [1] : vector<2x8xf32> to vector<2xf32>
    %38 = vector.shape_cast %37 : vector<2xf32> to vector<2x1xf32>
    %39 = tpu.reciprocal %38 {approx = true} : vector<2x1xf32> -> vector<2x1xf32>
    %40 = vector.broadcast %39 : vector<2x1xf32> to vector<2x8xf32>
    %41 = arith.mulf %36, %40 : vector<2x8xf32>
    %cst_23 = arith.constant 0.000000e+00 : f32
    %42 = vector.broadcast %cst_23 : f32 to vector<2x120xf32>
    %43 = tpu.concatenate %41, %42 in 1 : vector<2x8xf32>, vector<2x120xf32> -> vector<2x128xf32>
    %c0_24 = arith.constant 0 : index
    %c0_25 = arith.constant 0 : index
    %44 = vector.load %arg12[%c0_24, %c0_25] : memref<2x128xf32, #tpu.memory_space<vmem>>, vector<2x128xf32>
    tpu.vector_store %arg12[%c0_24, %c0_25], %43 {strides = array<i32>} : memref<2x128xf32, #tpu.memory_space<vmem>>, vector<2x128xf32>,
    %45 = vector.shape_cast %36 : vector<2x8xf32> to vector<2x8x1xf32>
    %46 = vector.broadcast %45 : vector<2x8x1xf32> to vector<2x8x32xf32>
    %47 = arith.mulf %15, %46 : vector<2x8x32xf32>
    %cst_26 = arith.constant dense<0.000000e+00> : vector<2x32xf32>
    %48 = vector.multi_reduction <add>, %47, %cst_26 [1] : vector<2x8x32xf32> to vector<2x32xf32>
    %49 = arith.truncf %48 : vector<2x32xf32> to vector<2x32xbf16>
    %c0_27 = arith.constant 0 : index
    %c0_28 = arith.constant 0 : index
    %50 = vector.load %arg8[%c0_27, %c0_28] : memref<32x128xbf16, #tpu.memory_space<vmem>>, vector<32x128xbf16>
    %cst_29 = arith.constant dense<0.000000e+00> : vector<2x128xf32>
    %51 = tpu.matmul %49, %50, %cst_29 {dimension_numbers = #tpu.dot_dimension_numbers<[1], [0], [0], [1], [0, 0, 1, 1], [], []>} : vector<2x32xbf16>, vector<32x128xbf16>, vector<2x128xf32> -> vector<2x128xf32>
    %52 = vector.broadcast %39 : vector<2x1xf32> to vector<2x128xf32>
    %53 = arith.mulf %51, %52 : vector<2x128xf32>
    %c0_30 = arith.constant 0 : index
    %c0_31 = arith.constant 0 : index
    %54 = vector.load %arg9[%c0_30, %c0_31] : memref<1x128xf32, #tpu.memory_space<vmem>>, vector<1x128xf32>
    %55 = vector.broadcast %54 : vector<1x128xf32> to vector<2x128xf32>
    %56 = arith.addf %53, %55 : vector<2x128xf32>
    %c0_32 = arith.constant 0 : index
    %c0_33 = arith.constant 0 : index
    %57 = vector.load %arg11[%c0_32, %c0_33] : memref<2x128xf32, #tpu.memory_space<vmem>>, vector<2x128xf32>
    tpu.vector_store %arg11[%c0_32, %c0_33], %56 {strides = array<i32>} : memref<2x128xf32, #tpu.memory_space<vmem>>, vector<2x128xf32>,
    return
  }
  func.func @transform_0(%arg0: i32) -> (i32, i32) {
    %c0_i32 = arith.constant 0 : i32
    %c0_i32_0 = arith.constant 0 : i32
    return %arg0, %c0_i32 : i32, i32
  }
  func.func @transform_1(%arg0: i32) -> (i32, i32, i32) {
    %c0_i32 = arith.constant 0 : i32
    %c0_i32_0 = arith.constant 0 : i32
    %c0_i32_1 = arith.constant 0 : i32
    return %arg0, %c0_i32, %c0_i32_0 : i32, i32, i32
  }
  func.func @transform_2(%arg0: i32) -> (i32, i32) {
    %c0_i32 = arith.constant 0 : i32
    %c0_i32_0 = arith.constant 0 : i32
    return %arg0, %c0_i32 : i32, i32
  }
  func.func @transform_3(%arg0: i32) -> (i32, i32) {
    %c0_i32 = arith.constant 0 : i32
    %c0_i32_0 = arith.constant 0 : i32
    %c0_i32_1 = arith.constant 0 : i32
    return %c0_i32, %c0_i32_0 : i32, i32
  }
  func.func @transform_4(%arg0: i32) -> (i32, i32) {
    %c0_i32 = arith.constant 0 : i32
    %c0_i32_0 = arith.constant 0 : i32
    %c0_i32_1 = arith.constant 0 : i32
    return %c0_i32, %c0_i32_0 : i32, i32
  }
  func.func @transform_5(%arg0: i32) -> (i32, i32) {
    %c0_i32 = arith.constant 0 : i32
    %c0_i32_0 = arith.constant 0 : i32
    %c0_i32_1 = arith.constant 0 : i32
    return %c0_i32, %c0_i32_0 : i32, i32
  }
  func.func @transform_6(%arg0: i32) -> (i32, i32) {
    %c0_i32 = arith.constant 0 : i32
    %c0_i32_0 = arith.constant 0 : i32
    %c0_i32_1 = arith.constant 0 : i32
    return %c0_i32, %c0_i32_0 : i32, i32
  }
  func.func @transform_7(%arg0: i32) -> (i32, i32) {
    %c0_i32 = arith.constant 0 : i32
    %c0_i32_0 = arith.constant 0 : i32
    %c0_i32_1 = arith.constant 0 : i32
    return %c0_i32, %c0_i32_0 : i32, i32
  }
  func.func @transform_8(%arg0: i32) -> (i32, i32) {
    %c0_i32 = arith.constant 0 : i32
    %c0_i32_0 = arith.constant 0 : i32
    %c0_i32_1 = arith.constant 0 : i32
    return %c0_i32, %c0_i32_0 : i32, i32
  }
  func.func @transform_9(%arg0: i32) -> (i32, i32) {
    %c0_i32 = arith.constant 0 : i32
    %c0_i32_0 = arith.constant 0 : i32
    %c0_i32_1 = arith.constant 0 : i32
    return %c0_i32, %c0_i32_0 : i32, i32
  }
  func.func @transform_10(%arg0: i32) -> (i32, i32) {
    %c0_i32 = arith.constant 0 : i32
    %c0_i32_0 = arith.constant 0 : i32
    return %arg0, %c0_i32 : i32, i32
  }
  func.func @transform_11(%arg0: i32) -> (i32, i32) {
    %c0_i32 = arith.constant 0 : i32
    %c0_i32_0 = arith.constant 0 : i32
    return %arg0, %c0_i32 : i32, i32
  }
}

module attributes {stable_mosaic.version = 11 : i64} {
  func.func @_attention_kernel(%arg0: i32, %arg1: memref<2x32xf32, #tpu.memory_space<vmem>>, %arg2: memref<2x8x32xf32, #tpu.memory_space<vmem>>, %arg3: memref<2x8xf32, #tpu.memory_space<vmem>>, %arg4: memref<32x32xbf16, #tpu.memory_space<vmem>>, %arg5: memref<1x32xf32, #tpu.memory_space<vmem>>, %arg6: memref<32x32xbf16, #tpu.memory_space<vmem>>, %arg7: memref<1x32xf32, #tpu.memory_space<vmem>>, %arg8: memref<32x128xbf16, #tpu.memory_space<vmem>>, %arg9: memref<1x128xf32, #tpu.memory_space<vmem>>, %arg10: memref<1x8xf32, #tpu.memory_space<vmem>>, %arg11: memref<2x128xf32, #tpu.memory_space<vmem>>, %arg12: memref<2x128xf32, #tpu.memory_space<vmem>>) attributes {dimension_semantics = [#tpu.dimension_semantics<parallel>], iteration_bounds = array<i64: 1>, scalar_prefetch = 0 : i64, scratch_operands = 0 : i64, tpu.core_type = #tpu.core_type<tc>, window_params = [{transform_indices = @transform_0, window_bounds = array<i64: 2, 32>}, {transform_indices = @transform_1, window_bounds = array<i64: 2, 8, 32>}, {transform_indices = @transform_2, window_bounds = array<i64: 2, 8>}, {pipeline_mode = #tpu.pipeline_mode<synchronous>, transform_indices = @transform_3, window_bounds = array<i64: 32, 32>}, {pipeline_mode = #tpu.pipeline_mode<synchronous>, transform_indices = @transform_4, window_bounds = array<i64: 1, 32>}, {pipeline_mode = #tpu.pipeline_mode<synchronous>, transform_indices = @transform_5, window_bounds = array<i64: 32, 32>}, {pipeline_mode = #tpu.pipeline_mode<synchronous>, transform_indices = @transform_6, window_bounds = array<i64: 1, 32>}, {pipeline_mode = #tpu.pipeline_mode<synchronous>, transform_indices = @transform_7, window_bounds = array<i64: 32, 128>}, {pipeline_mode = #tpu.pipeline_mode<synchronous>, transform_indices = @transform_8, window_bounds = array<i64: 1, 128>}, {pipeline_mode = #tpu.pipeline_mode<synchronous>, transform_indices = @transform_9, window_bounds = array<i64: 1, 8>}, {transform_indices = @transform_10, window_bounds = array<i64: 2, 128>}, {transform_indices = @transform_11, window_bounds = array<i64: 2, 128>}]} {
    %c0 = arith.constant 0 : index
    %c0_0 = arith.constant 0 : index
    %0 = vector.load %arg1[%c0, %c0_0] : memref<2x32xf32, #tpu.memory_space<vmem>>, vector<2x32xf32>
    %1 = arith.truncf %0 : vector<2x32xf32> to vector<2x32xbf16>
    %c0_1 = arith.constant 0 : index
    %c0_2 = arith.constant 0 : index
    %2 = vector.load %arg4[%c0_1, %c0_2] : memref<32x32xbf16, #tpu.memory_space<vmem>>, vector<32x32xbf16>
    %cst = arith.constant dense<0.000000e+00> : vector<2x32xf32>
    %3 = tpu.matmul %1, %2, %cst {dimension_numbers = #tpu.dot_dimension_numbers<[1], [0], [0], [1], [0, 0, 1, 1], [], []>} : vector<2x32xbf16>, vector<32x32xbf16>, vector<2x32xf32> -> vector<2x32xf32>
    %c0_3 = arith.constant 0 : index
    %c0_4 = arith.constant 0 : index
    %4 = vector.load %arg5[%c0_3, %c0_4] : memref<1x32xf32, #tpu.memory_space<vmem>>, vector<1x32xf32>
    %5 = vector.broadcast %4 : vector<1x32xf32> to vector<2x32xf32>
    %6 = arith.addf %3, %5 : vector<2x32xf32>
    %7 = arith.truncf %6 : vector<2x32xf32> to vector<2x32xbf16>
    %c0_5 = arith.constant 0 : index
    %c0_6 = arith.constant 0 : index
    %8 = vector.load %arg6[%c0_5, %c0_6] : memref<32x32xbf16, #tpu.memory_space<vmem>>, vector<32x32xbf16>
    %cst_7 = arith.constant dense<0.000000e+00> : vector<2x32xf32>
    %9 = tpu.matmul %7, %8, %cst_7 {dimension_numbers = #tpu.dot_dimension_numbers<[1], [0], [0], [1], [0, 0, 1, 1], [], []>} : vector<2x32xbf16>, vector<32x32xbf16>, vector<2x32xf32> -> vector<2x32xf32>
    %c0_8 = arith.constant 0 : index
    %c0_9 = arith.constant 0 : index
    %10 = vector.load %arg7[%c0_8, %c0_9] : memref<1x32xf32, #tpu.memory_space<vmem>>, vector<1x32xf32>
    %11 = vector.broadcast %10 : vector<1x32xf32> to vector<2x32xf32>
    %12 = arith.mulf %6, %11 : vector<2x32xf32>
    %cst_10 = arith.constant dense<0.000000e+00> : vector<2xf32>
    %13 = vector.multi_reduction <add>, %12, %cst_10 [1] : vector<2x32xf32> to vector<2xf32>
    %14 = vector.shape_cast %13 : vector<2xf32> to vector<2x1xf32>
    %c0_11 = arith.constant 0 : index
    %c0_12 = arith.constant 0 : index
    %c0_13 = arith.constant 0 : index
    %15 = vector.load %arg2[%c0_11, %c0_12, %c0_13] : memref<2x8x32xf32, #tpu.memory_space<vmem>>, vector<2x8x32xf32>
    %16 = vector.shape_cast %9 : vector<2x32xf32> to vector<2x1x32xf32>
    %17 = vector.broadcast %16 : vector<2x1x32xf32> to vector<2x8x32xf32>
    %18 = arith.mulf %15, %17 : vector<2x8x32xf32>
    %cst_14 = arith.constant dense<0.000000e+00> : vector<2x8xf32>
    %19 = vector.multi_reduction <add>, %18, %cst_14 [2] : vector<2x8x32xf32> to vector<2x8xf32>
    %20 = vector.broadcast %14 : vector<2x1xf32> to vector<2x8xf32>
    %21 = arith.addf %19, %20 : vector<2x8xf32>
    %cst_15 = arith.constant 0.176776692 : f32
    %22 = vector.broadcast %cst_15 : f32 to vector<2x8xf32>
    %23 = arith.mulf %21, %22 : vector<2x8xf32>
    %c0_16 = arith.constant 0 : index
    %c0_17 = arith.constant 0 : index
    %24 = vector.load %arg3[%c0_16, %c0_17] : memref<2x8xf32, #tpu.memory_space<vmem>>, vector<2x8xf32>
    %c0_18 = arith.constant 0 : index
    %c0_19 = arith.constant 0 : index
    %25 = vector.load %arg10[%c0_18, %c0_19] : memref<1x8xf32, #tpu.memory_space<vmem>>, vector<1x8xf32>
    %cst_20 = arith.constant 0.000000e+00 : f32
    %26 = vector.broadcast %cst_20 : f32 to vector<1x8xf32>
    %27 = arith.subf %26, %25 : vector<1x8xf32>
    %28 = vector.broadcast %27 : vector<1x8xf32> to vector<2x8xf32>
    %29 = arith.mulf %28, %24 : vector<2x8xf32>
    %30 = math.exp %29 : vector<2x8xf32>
    %31 = arith.mulf %23, %30 : vector<2x8xf32>
    %cst_21 = arith.constant dense<0xFF800000> : vector<2xf32>
    %32 = vector.multi_reduction <maximumf>, %31, %cst_21 [1] : vector<2x8xf32> to vector<2xf32>
    %33 = vector.shape_cast %32 : vector<2xf32> to vector<2x1xf32>
    %34 = vector.broadcast %33 : vector<2x1xf32> to vector<2x8xf32>
    %35 = arith.subf %31, %34 : vector<2x8xf32>
    %36 = math.exp %35 : vector<2x8xf32>
    %cst_22 = arith.constant dense<0.000000e+00> : vector<2xf32>
    %37 = vector.multi_reduction <add>, %36, %cst_22 [1] : vector<2x8xf32> to vector<2xf32>
    %38 = vector.shape_cast %37 : vector<2xf32> to vector<2x1xf32>
    %39 = tpu.reciprocal %38 {approx = true} : vector<2x1xf32> -> vector<2x1xf32>
    %40 = vector.broadcast %39 : vector<2x1xf32> to vector<2x8xf32>
    %41 = arith.mulf %36, %40 : vector<2x8xf32>
    %cst_23 = arith.constant 0.000000e+00 : f32
    %42 = vector.broadcast %cst_23 : f32 to vector<2x120xf32>
    %43 = tpu.concatenate %41, %42 in 1 : vector<2x8xf32>, vector<2x120xf32> -> vector<2x128xf32>
    %c0_24 = arith.constant 0 : index
    %c0_25 = arith.constant 0 : index
    %44 = vector.load %arg12[%c0_24, %c0_25] : memref<2x128xf32, #tpu.memory_space<vmem>>, vector<2x128xf32>
    tpu.vector_store %arg12[%c0_24, %c0_25], %43 {strides = array<i32>} : memref<2x128xf32, #tpu.memory_space<vmem>>, vector<2x128xf32>,
    %45 = vector.shape_cast %36 : vector<2x8xf32> to vector<2x8x1xf32>
    %46 = vector.broadcast %45 : vector<2x8x1xf32> to vector<2x8x32xf32>
    %47 = arith.mulf %15, %46 : vector<2x8x32xf32>
    %cst_26 = arith.constant dense<0.000000e+00> : vector<2x32xf32>
    %48 = vector.multi_reduction <add>, %47, %cst_26 [1] : vector<2x8x32xf32> to vector<2x32xf32>
    %49 = arith.truncf %48 : vector<2x32xf32> to vector<2x32xbf16>
    %c0_27 = arith.constant 0 : index
    %c0_28 = arith.constant 0 : index
    %50 = vector.load %arg8[%c0_27, %c0_28] : memref<32x128xbf16, #tpu.memory_space<vmem>>, vector<32x128xbf16>
    %cst_29 = arith.constant dense<0.000000e+00> : vector<2x128xf32>
    %51 = tpu.matmul %49, %50, %cst_29 {dimension_numbers = #tpu.dot_dimension_numbers<[1], [0], [0], [1], [0, 0, 1, 1], [], []>} : vector<2x32xbf16>, vector<32x128xbf16>, vector<2x128xf32> -> vector<2x128xf32>
    %52 = vector.broadcast %39 : vector<2x1xf32> to vector<2x128xf32>
    %53 = arith.mulf %51, %52 : vector<2x128xf32>
    %c0_30 = arith.constant 0 : index
    %c0_31 = arith.constant 0 : index
    %54 = vector.load %arg9[%c0_30, %c0_31] : memref<1x128xf32, #tpu.memory_space<vmem>>, vector<1x128xf32>
    %55 = vector.broadcast %54 : vector<1x128xf32> to vector<2x128xf32>
    %56 = arith.addf %53, %55 : vector<2x128xf32>
    %c0_32 = arith.constant 0 : index
    %c0_33 = arith.constant 0 : index
    %57 = vector.load %arg11[%c0_32, %c0_33] : memref<2x128xf32, #tpu.memory_space<vmem>>, vector<2x128xf32>
    tpu.vector_store %arg11[%c0_32, %c0_33], %56 {strides = array<i32>} : memref<2x128xf32, #tpu.memory_space<vmem>>, vector<2x128xf32>,
    return
  }
  func.func @transform_0(%arg0: i32) -> (i32, i32) {
    %c0_i32 = arith.constant 0 : i32
    %c0_i32_0 = arith.constant 0 : i32
    return %arg0, %c0_i32 : i32, i32
  }
  func.func @transform_1(%arg0: i32) -> (i32, i32, i32) {
    %c0_i32 = arith.constant 0 : i32
    %c0_i32_0 = arith.constant 0 : i32
    %c0_i32_1 = arith.constant 0 : i32
    return %arg0, %c0_i32, %c0_i32_0 : i32, i32, i32
  }
  func.func @transform_2(%arg0: i32) -> (i32, i32) {
    %c0_i32 = arith.constant 0 : i32
    %c0_i32_0 = arith.constant 0 : i32
    return %arg0, %c0_i32 : i32, i32
  }
  func.func @transform_3(%arg0: i32) -> (i32, i32) {
    %c0_i32 = arith.constant 0 : i32
    %c0_i32_0 = arith.constant 0 : i32
    %c0_i32_1 = arith.constant 0 : i32
    return %c0_i32, %c0_i32_0 : i32, i32
  }
  func.func @transform_4(%arg0: i32) -> (i32, i32) {
    %c0_i32 = arith.constant 0 : i32
    %c0_i32_0 = arith.constant 0 : i32
    %c0_i32_1 = arith.constant 0 : i32
    return %c0_i32, %c0_i32_0 : i32, i32
  }
  func.func @transform_5(%arg0: i32) -> (i32, i32) {
    %c0_i32 = arith.constant 0 : i32
    %c0_i32_0 = arith.constant 0 : i32
    %c0_i32_1 = arith.constant 0 : i32
    return %c0_i32, %c0_i32_0 : i32, i32
  }
  func.func @transform_6(%arg0: i32) -> (i32, i32) {
    %c0_i32 = arith.constant 0 : i32
    %c0_i32_0 = arith.constant 0 : i32
    %c0_i32_1 = arith.constant 0 : i32
    return %c0_i32, %c0_i32_0 : i32, i32
  }
  func.func @transform_7(%arg0: i32) -> (i32, i32) {
    %c0_i32 = arith.constant 0 : i32
    %c0_i32_0 = arith.constant 0 : i32
    %c0_i32_1 = arith.constant 0 : i32
    return %c0_i32, %c0_i32_0 : i32, i32
  }
  func.func @transform_8(%arg0: i32) -> (i32, i32) {
    %c0_i32 = arith.constant 0 : i32
    %c0_i32_0 = arith.constant 0 : i32
    %c0_i32_1 = arith.constant 0 : i32
    return %c0_i32, %c0_i32_0 : i32, i32
  }
  func.func @transform_9(%arg0: i32) -> (i32, i32) {
    %c0_i32 = arith.constant 0 : i32
    %c0_i32_0 = arith.constant 0 : i32
    %c0_i32_1 = arith.constant 0 : i32
    return %c0_i32, %c0_i32_0 : i32, i32
  }
  func.func @transform_10(%arg0: i32) -> (i32, i32) {
    %c0_i32 = arith.constant 0 : i32
    %c0_i32_0 = arith.constant 0 : i32
    return %arg0, %c0_i32 : i32, i32
  }
  func.func @transform_11(%arg0: i32) -> (i32, i32) {
    %c0_i32 = arith.constant 0 : i32
    %c0_i32_0 = arith.constant 0 : i32
    return %arg0, %c0_i32 : i32, i32
  }
}

</mosaic_0001>

<llo_original>
// kernel: tpu_custom_call.1
$region0: #{tpu_custom_call.1}
  #allocation0 [shape = 'u32[]', space=smem, size = 0x4, offset = 0x4, fixed_abs, tag = 'smem constant byte address 0x4 - core index']
  #allocation1 [shape = 'u32[144,128]{1,0:T(1,128)}', space=vmem, size = 0x12000, scoped, tag = 'internal scratch']
  %s0 = inlined_call_operand.hbm [shape: f32[2,32], index: 0, kind: input, shape index: {}]
  %s1 = inlined_call_operand.hbm [shape: f32[2,8,32], index: 1, kind: input, shape index: {}]
  %s2 = inlined_call_operand.vmem [shape: f32[2,8], index: 2, kind: input, shape index: {}]
  %s3 = inlined_call_operand.hbm [shape: bf16[32,32], index: 3, kind: input, shape index: {}]
  %s4 = inlined_call_operand.hbm [shape: f32[1,32], index: 4, kind: input, shape index: {}]
  %s5 = inlined_call_operand.vmem [shape: bf16[32,32], index: 5, kind: input, shape index: {}]
  %s6 = inlined_call_operand.vmem [shape: f32[1,32], index: 6, kind: input, shape index: {}]
  %s7 = inlined_call_operand.hbm [shape: bf16[32,128], index: 7, kind: input, shape index: {}]
  %s8 = inlined_call_operand.vmem [shape: f32[1,128], index: 8, kind: input, shape index: {}]
  %s9 = inlined_call_operand.vmem [shape: f32[1,8], index: 9, kind: input, shape index: {}]
  %s10 = inlined_call_operand.hbm [shape: f32[2,128], index: 10, kind: output, shape index: {0}]
  %s11 = inlined_call_operand.hbm [shape: f32[2,128], index: 11, kind: output, shape index: {1}]
  %12 = xla_tuple %s10, %s11
  %s13 = sld [smem:[#allocation0]]
  $region78: #{tpu_custom_call.1} parent=0
    _
  %s15 = ssub.s32 1, %s13
  %s16 = scalar_select 0, %s15, %s13
  $region1: #{tpu_custom_call.1} parent=0
    #allocation2 [shape = 'u8[1024]{0}', space=vmem, size = 0x400, scoped, tag = 'input window, operand 0, single buffered']
    #allocation3 [shape = 's32[1]{0}', space=sflag, size = 0x4, scoped, tag = 'scoped memory for tpu_custom_call.1']
    #allocation4 [shape = 's32[1]{0}', space=sflag, size = 0x4, scoped, tag = 'scoped memory for tpu_custom_call.1']
    #allocation5 [shape = 'u8[8192]{0}', space=vmem, size = 0x2000, scoped, tag = 'input window, operand 1, single buffered']
    #allocation6 [shape = 's32[1]{0}', space=sflag, size = 0x4, scoped, tag = 'scoped memory for tpu_custom_call.1']
    #allocation7 [shape = 'u8[8192]{0}', space=vmem, size = 0x2000, scoped, tag = 'input window, operand 3, single buffered']
    #allocation8 [shape = 'u8[512]{0}', space=vmem, size = 0x400, scoped, tag = 'input window, operand 4, single buffered']
    #allocation9 [shape = 's32[1]{0}', space=sflag, size = 0x4, scoped, tag = 'scoped memory for tpu_custom_call.1']
    #allocation10 [shape = 'u8[8192]{0}', space=vmem, size = 0x2000, scoped, tag = 'input window, operand 7, single buffered']
    #allocation11 [shape = 'u8[1024]{0}', space=vmem, size = 0x400, scoped, tag = 'output window, operand 0, single buffered']
    #allocation12 [shape = 'u8[1024]{0}', space=vmem, size = 0x400, scoped, tag = 'output window, operand 1, single buffered']
    #allocation13 [shape = 's32[1]{0}', space=sflag, size = 0x4, scoped, tag = 'scoped memory for tpu_custom_call.1']
    %17 = vsyncpa [#allocation3], 0
    %18 = vsyncpa [#allocation6], 0
    %19 = vsyncpa [#allocation9], 0
    %20 = vsyncpa [#allocation4], 0
    %21 = vsyncpa [#allocation13], 0
    // Predicated region
    $region2: #{tpu_custom_call.1} parent=1 // pred_check
      _
    $region3: #{tpu_custom_call.1} parent=1 // pred_check_branch
      %23 = sbr.rel (0) target = $region5
    $region4: #{tpu_custom_call.1} parent=1 // pred_region
      %s25 = ssub.s32 32, 32
      %26 = vsyncadd [#allocation3], %s25
      %s28 = sshll.u32 [#allocation2], 4
      %s29 = int_to_ptr.vmem [resolvable:$true] %s28
      %31 = dma.hbm_to_vmem [thread:$0]  %s0, 32, %s29, [#allocation3]
    $region5: #{tpu_custom_call.1} parent=1 // pred_fallthru
      _
    // Predicated region
    $region6: #{tpu_custom_call.1} parent=1 // pred_check
      _
    $region7: #{tpu_custom_call.1} parent=1 // pred_check_branch
      %33 = sbr.rel (0) target = $region9
    $region8: #{tpu_custom_call.1} parent=1 // pred_region
      %s35 = ssub.s32 256, 256
      %36 = vsyncadd [#allocation6], %s35
      %s37 = sshll.u32 [#allocation5], 4
      %s38 = int_to_ptr.vmem [resolvable:$true] %s37
      %43 = dma.hbm_to_vmem [thread:$0]  %s1, 256, %s38, [#allocation6], 128, 128, 8
    $region9: #{tpu_custom_call.1} parent=1 // pred_fallthru
      _
    // Predicated region
    $region10: #{tpu_custom_call.1} parent=1 // pred_check
      _
    $region11: #{tpu_custom_call.1} parent=1 // pred_check_branch
      %45 = sbr.rel (0) target = $region13
    $region12: #{tpu_custom_call.1} parent=1 // pred_region
      _
    $region13: #{tpu_custom_call.1} parent=1 // pred_fallthru
      _
    // Predicated region
    $region14: #{tpu_custom_call.1} parent=1 // pred_check
      _
    $region15: #{tpu_custom_call.1} parent=1 // pred_check_branch
      %47 = sbr.rel (0) target = $region17
    $region16: #{tpu_custom_call.1} parent=1 // pred_region
      %s49 = ssub.s32 256, 256
      %50 = vsyncadd [#allocation6], %s49
      %s51 = sshll.u32 [#allocation7], 4
      %s52 = int_to_ptr.vmem [resolvable:$true] %s51
      %57 = dma.hbm_to_vmem [thread:$0]  %s3, 256, %s52, [#allocation6], 64, 64, 4
    $region17: #{tpu_custom_call.1} parent=1 // pred_fallthru
      _
    // Predicated region
    $region18: #{tpu_custom_call.1} parent=1 // pred_check
      _
    $region19: #{tpu_custom_call.1} parent=1 // pred_check_branch
      %59 = sbr.rel (0) target = $region21
    $region20: #{tpu_custom_call.1} parent=1 // pred_region
      %s61 = ssub.s32 16, 16
      %62 = vsyncadd [#allocation9], %s61
      %s64 = sshll.u32 [#allocation8], 4
      %s65 = int_to_ptr.vmem [resolvable:$true] %s64
      %67 = dma.hbm_to_vmem [thread:$0]  %s4, 16, %s65, [#allocation9]
    $region21: #{tpu_custom_call.1} parent=1 // pred_fallthru
      _
    // Predicated region
    $region22: #{tpu_custom_call.1} parent=1 // pred_check
      _
    $region23: #{tpu_custom_call.1} parent=1 // pred_check_branch
      %69 = sbr.rel (0) target = $region25
    $region24: #{tpu_custom_call.1} parent=1 // pred_region
      _
    $region25: #{tpu_custom_call.1} parent=1 // pred_fallthru
      _
    // Predicated region
    $region26: #{tpu_custom_call.1} parent=1 // pred_check
      _
    $region27: #{tpu_custom_call.1} parent=1 // pred_check_branch
      %71 = sbr.rel (0) target = $region29
    $region28: #{tpu_custom_call.1} parent=1 // pred_region
      _
    $region29: #{tpu_custom_call.1} parent=1 // pred_fallthru
      _
    // Predicated region
    $region30: #{tpu_custom_call.1} parent=1 // pred_check
      _
    $region31: #{tpu_custom_call.1} parent=1 // pred_check_branch
      %73 = sbr.rel (0) target = $region33
    $region32: #{tpu_custom_call.1} parent=1 // pred_region
      %s75 = ssub.s32 256, 256
      %76 = vsyncadd [#allocation9], %s75
      %s77 = sshll.u32 [#allocation10], 4
      %s78 = int_to_ptr.vmem [resolvable:$true] %s77
      %83 = dma.hbm_to_vmem [thread:$0]  %s7, 256, %s78, [#allocation9], 64, 64, 4
    $region33: #{tpu_custom_call.1} parent=1 // pred_fallthru
      _
    // Predicated region
    $region34: #{tpu_custom_call.1} parent=1 // pred_check
      _
    $region35: #{tpu_custom_call.1} parent=1 // pred_check_branch
      %85 = sbr.rel (0) target = $region37
    $region36: #{tpu_custom_call.1} parent=1 // pred_region
      _
    $region37: #{tpu_custom_call.1} parent=1 // pred_fallthru
      _
    // Predicated region
    $region38: #{tpu_custom_call.1} parent=1 // pred_check
      _
    $region39: #{tpu_custom_call.1} parent=1 // pred_check_branch
      %87 = sbr.rel (0) target = $region41
    $region40: #{tpu_custom_call.1} parent=1 // pred_region
      _
    $region41: #{tpu_custom_call.1} parent=1 // pred_fallthru
      _
    // Predicated region
    $region42: #{tpu_custom_call.1} parent=1 // pred_check
      _
    $region43: #{tpu_custom_call.1} parent=1 // pred_check_branch
      %89 = sbr.rel (0) target = $region45
    $region44: #{tpu_custom_call.1} parent=1 // pred_region
      %90 = dma.done [#allocation3], 32
    $region45: #{tpu_custom_call.1} parent=1 // pred_fallthru
      _
    // Predicated region
    $region46: #{tpu_custom_call.1} parent=1 // pred_check
      _
    $region47: #{tpu_custom_call.1} parent=1 // pred_check_branch
      %92 = sbr.rel (0) target = $region49
    $region48: #{tpu_custom_call.1} parent=1 // pred_region
      %93 = dma.done [#allocation6], 256
    $region49: #{tpu_custom_call.1} parent=1 // pred_fallthru
      _
    // Predicated region
    $region50: #{tpu_custom_call.1} parent=1 // pred_check
      _
    $region51: #{tpu_custom_call.1} parent=1 // pred_check_branch
      %95 = sbr.rel (0) target = $region53
    $region52: #{tpu_custom_call.1} parent=1 // pred_region
      %96 = dma.done [#allocation6], 256
    $region53: #{tpu_custom_call.1} parent=1 // pred_fallthru
      _
    // Predicated region
    $region54: #{tpu_custom_call.1} parent=1 // pred_check
      _
    $region55: #{tpu_custom_call.1} parent=1 // pred_check_branch
      %98 = sbr.rel (0) target = $region57
    $region56: #{tpu_custom_call.1} parent=1 // pred_region
      %99 = dma.done [#allocation9], 16
    $region57: #{tpu_custom_call.1} parent=1 // pred_fallthru
      _
    // Predicated region
    $region58: #{tpu_custom_call.1} parent=1 // pred_check
      _
    $region59: #{tpu_custom_call.1} parent=1 // pred_check_branch
      %101 = sbr.rel (0) target = $region61
    $region60: #{tpu_custom_call.1} parent=1 // pred_region
      %102 = dma.done [#allocation9], 256
    $region61: #{tpu_custom_call.1} parent=1 // pred_fallthru
      _
    %v104 = vld [vmem:[#allocation2] sm:$0x3]
    %v105 = vpack.c.bf16 %v104, %v104
    %v106 = vld [vmem:[#allocation7] sm:$0xf]
    %v107 = vld [vmem:[#allocation7 + $0x4] sm:$0xf]
    %v108 = vld [vmem:[#allocation7 + $0x8] sm:$0xf]
    %v109 = vld [vmem:[#allocation7 + $0xc] sm:$0xf]
    %v110 = vld [vmem:[#allocation8] sm:$0x1]
    %v112 = vlaneseq
    %v113 = vshrl.u32 %v112, 7
    %v114 = vsub.s32 0, %v113
    %v115 = vrot.slane %v110, %v114
    %v121 = vunpack.c.l.b16 %v106
    %v122 = vunpack.c.l.b16 %v107
    %v123 = vunpack.c.l.b16 %v108
    %v124 = vunpack.c.l.b16 %v109
    %v125 = vpack.c.b16 %v122, %v121
    %v126 = vpack.c.b16 %v124, %v123
    %vm129 = vcmask 261120
    %v131 = vsel %vm129, %v105, 0
    %133 = vmatprep.subr.bf16.mxu0 0
    %134 = vmatpush1.bf16.msra.mxu0 %v125
    %135 = vmatprep.subr.bf16.mxu0 0
    %136 = vmatpush1.bf16.msra.mxu0 %v126
    %137 = vmatprep.subr.bf16.mxu0 0
    %138 = vmatpush1.bf16.msra.mxu0 0
    %139 = vmatprep.subr.bf16.mxu0 0
    %140 = vmatpush1.bf16.msra.mxu0 0
    %141 = vmatprep.subr.bf16.mxu0 0
    %142 = vmatpush1.bf16.msra.mxu0 0
    %143 = vmatprep.subr.bf16.mxu0 0
    %144 = vmatpush1.bf16.msra.mxu0 0
    %145 = vmatprep.subr.bf16.mxu0 0
    %146 = vmatpush1.bf16.msra.mxu0 0
    %147 = vmatprep.subr.bf16.mxu0 0
    %148 = vmatpush1.bf16.msra.mxu0 0
    %149 = vmatprep.subr.bf16.mxu0 0
    %150 = vmatpush1.bf16.msra.mxu0 0
    %151 = vmatprep.subr.bf16.mxu0 0
    %152 = vmatpush1.bf16.msra.mxu0 0
    %153 = vmatprep.subr.bf16.mxu0 0
    %154 = vmatpush1.bf16.msra.mxu0 0
    %155 = vmatprep.subr.bf16.mxu0 0
    %156 = vmatpush1.bf16.msra.mxu0 0
    %157 = vmatprep.subr.bf16.mxu0 0
    %158 = vmatpush1.bf16.msra.mxu0 0
    %159 = vmatprep.subr.bf16.mxu0 0
    %160 = vmatpush1.bf16.msra.mxu0 0
    %161 = vmatprep.subr.bf16.mxu0 0
    %162 = vmatpush1.bf16.msra.mxu0 0
    %163 = vmatprep.subr.bf16.mxu0 0
    %164 = vmatpush1.bf16.msra.mxu0 0
    %165 = vmatprep.mubr.bf16.mxu0 0
    %166 = vmatmul.mubr.bf16.gmra.mrb[0].mxu0 %v131
    %v167 = vpop.f32.mrb[0].mxu0
    %v168 = vadd.f32 %v115, %v167
    %v169 = vpop.f32.mrb[0].mxu0
    %v170 = vpop.f32.mrb[0].mxu0
    %v171 = vpop.f32.mrb[0].mxu0
    %172 = vdwg.mxu0
    %v173 = vpack.c.bf16 %v168, %v168
    %v174 = vld [vmem:[%s5] sm:$0xf]
    %v175 = vld [vmem:[%s5 + $0x4] sm:$0xf]
    %v176 = vld [vmem:[%s5 + $0x8] sm:$0xf]
    %v177 = vld [vmem:[%s5 + $0xc] sm:$0xf]
    %v182 = vunpack.c.l.b16 %v174
    %v183 = vunpack.c.l.b16 %v175
    %v184 = vunpack.c.l.b16 %v176
    %v185 = vunpack.c.l.b16 %v177
    %v186 = vpack.c.b16 %v183, %v182
    %v187 = vpack.c.b16 %v185, %v184
    %v191 = vsel %vm129, %v173, 0
    %193 = vmatprep.subr.bf16.mxu0 0
    %194 = vmatpush1.bf16.msra.mxu0 %v186
    %195 = vmatprep.subr.bf16.mxu0 0
    %196 = vmatpush1.bf16.msra.mxu0 %v187
    %197 = vmatprep.subr.bf16.mxu0 0
    %198 = vmatpush1.bf16.msra.mxu0 0
    %199 = vmatprep.subr.bf16.mxu0 0
    %200 = vmatpush1.bf16.msra.mxu0 0
    %201 = vmatprep.subr.bf16.mxu0 0
    %202 = vmatpush1.bf16.msra.mxu0 0
    %203 = vmatprep.subr.bf16.mxu0 0
    %204 = vmatpush1.bf16.msra.mxu0 0
    %205 = vmatprep.subr.bf16.mxu0 0
    %206 = vmatpush1.bf16.msra.mxu0 0
    %207 = vmatprep.subr.bf16.mxu0 0
    %208 = vmatpush1.bf16.msra.mxu0 0
    %209 = vmatprep.subr.bf16.mxu0 0
    %210 = vmatpush1.bf16.msra.mxu0 0
    %211 = vmatprep.subr.bf16.mxu0 0
    %212 = vmatpush1.bf16.msra.mxu0 0
    %213 = vmatprep.subr.bf16.mxu0 0
    %214 = vmatpush1.bf16.msra.mxu0 0
    %215 = vmatprep.subr.bf16.mxu0 0
    %216 = vmatpush1.bf16.msra.mxu0 0
    %217 = vmatprep.subr.bf16.mxu0 0
    %218 = vmatpush1.bf16.msra.mxu0 0
    %219 = vmatprep.subr.bf16.mxu0 0
    %220 = vmatpush1.bf16.msra.mxu0 0
    %221 = vmatprep.subr.bf16.mxu0 0
    %222 = vmatpush1.bf16.msra.mxu0 0
    %223 = vmatprep.subr.bf16.mxu0 0
    %224 = vmatpush1.bf16.msra.mxu0 0
    %225 = vmatprep.mubr.bf16.mxu0 0
    %226 = vmatmul.mubr.bf16.gmra.mrb[0].mxu0 %v191
    %v227 = vpop.f32.mrb[0].mxu0
    %v228 = vadd.f32 0.0, %v227
    %v229 = vpop.f32.mrb[0].mxu0
    %v230 = vpop.f32.mrb[0].mxu0
    %v231 = vpop.f32.mrb[0].mxu0
    %232 = vdwg.mxu0
    %v233 = vld [vmem:[%s6] sm:$0x1]
    %v235 = vlaneseq
    %v236 = vshrl.u32 %v235, 7
    %v237 = vsub.s32 0, %v236
    %v238 = vrot.slane %v233, %v237
    %v240 = vmul.f32 %v168, %v238
    %vm241 = vcmask 254976
    %v242 = vsel %vm241, %v240, 0.0
    %243 = vadd.xlane.f32.xlu0 %v242
    %v244 = vpop.xlane.xlu0 %243
    %v245 = vld [vmem:[#allocation5] sm:$0xff]
    %v246 = vld [vmem:[#allocation5 + $0x8] sm:$0xff]
    %v249 = vunpack.c.l.s4 1966171168
    %v250 = vunpack.c.0.s8 %v249
    %v251 = vlaneseq
    %v252 = vshrl.u32 %v251, 7
    %v253 = vsub.s32 %v250, %v252
    %v254 = vrot.slane %v228, %v253
    %v255 = vcombine.high %v254, %v254
    %v257 = vunpack.c.l.s4 1966171168
    %v258 = vunpack.c.0.s8 %v257
    %v259 = vlaneseq
    %v260 = vshrl.u32 %v259, 7
    %v261 = vsub.s32 %v258, %v260
    %v262 = vrot.slane %v254, %v261
    %v264 = vunpack.c.l.s4 1966171168
    %v265 = vunpack.c.0.s8 %v264
    %v266 = vlaneseq
    %v267 = vshrl.u32 %v266, 7
    %v268 = vsub.s32 %v265, %v267
    %v269 = vrot.slane %v255, %v268
    %v270 = vlaneseq
    %v271 = vshrl.u32 %v270, 7
    %v272 = vsub.s32 0, %v271
    %v273 = vrot.slane %v262, %v272
    %v274 = vlaneseq
    %v275 = vshrl.u32 %v274, 7
    %v276 = vsub.s32 0, %v275
    %v277 = vrot.slane %v269, %v276
    %v280 = vmul.f32 %v245, %v273
    %v281 = vmul.f32 %v246, %v277
    %v282 = vsel %vm129, %v280, 0.0
    %283 = vadd.xlane.f32.xlu0 %v282
    %v284 = vpop.xlane.xlu0 %283
    %v285 = vsel %vm129, %v281, 0.0
    %286 = vadd.xlane.f32.xlu0 %v285
    %v287 = vpop.xlane.xlu0 %286
    %v289 = vlaneseq
    %v290 = vshrl.u32 %v289, 7
    %v291 = vsub.s32 0, %v290
    %v292 = vrot.slane %v244, %v291
    %v293 = vlaneseq
    %v294 = vshrl.u32 %v293, 7
    %v295 = vsub.s32 1, %v294
    %v296 = vrot.slane %v244, %v295
    %v299 = vadd.f32 %v284, %v292
    %v300 = vadd.f32 %v287, %v296
    %v301 = vmul.f32 %v299, 0.17677669
    %v302 = vmul.f32 %v300, 0.17677669
    %v303 = vld [vmem:[%s2] sm:$0x3]
    %v304 = vld [vmem:[%s9] sm:$0x1]
    %v305 = vsub.f32 0.0, %v304
    %v307 = vlaneseq
    %v308 = vshrl.u32 %v307, 7
    %v309 = vsub.s32 0, %v308
    %v310 = vrot.slane %v305, %v309
    %v312 = vmul.f32 %v310, %v303
    %v313 = vmul.f32 %v312, 1.442695
    %v314 = vpow.pop %v313
    %v316 = vlaneseq
    %v317 = vshrl.u32 %v316, 7
    %v318 = vsub.s32 0, %v317
    %v319 = vrot.slane %v314, %v318
    %321 = vbcast.lane.b32.xlu0 %v319, 256
    %v322 = vpop.permute.xlu0 %321
    %v323 = vlaneseq
    %v324 = vshrl.u32 %v323, 7
    %v325 = vsub.s32 1, %v324
    %v326 = vrot.slane %v314, %v325
    %328 = vbcast.lane.b32.xlu0 %v326, 256
    %v329 = vpop.permute.xlu0 %328
    %v332 = vmul.f32 %v301, %v322
    %v333 = vmul.f32 %v302, %v329
    %336 = vset.pattern.permute.xlu0 0
    %337 = vperm.xlu0 %336, %v332
    %v338 = vpop.permute.xlu0 %337
    %339 = vset.pattern.permute.xlu0 0
    %340 = vperm.xlu0 %339, %v333
    %v341 = vpop.permute.xlu0 %340
    %v342 = vlaneseq
    %v343 = vand.u32 %v342, 127
    %v344 = vlaneseq
    %v345 = vshrl.u32 %v344, 7
    %v346 = vsub.s32 %v343, %v345
    %v347 = vrot.slane %v338, %v346
    %v348 = vlaneseq
    %v349 = vshrl.u32 %v348, 7
    %v350 = vsub.s32 %v343, %v349
    %v351 = vrot.slane %v341, %v350
    %vm352 = vcmask 1041409
    %v353 = vsel %vm352, %v351, %v347
    %vm355 = vcmask 58368
    %v356 = vsel %vm355, %v353, -inf
    %357 = vmax.xlane.f32.xlu0 %v356
    %v358 = vpop.xlane.xlu0 %357
    %v360 = vlaneseq
    %v361 = vshrl.u32 %v360, 7
    %v362 = vsub.s32 0, %v361
    %v363 = vrot.slane %v358, %v362
    %v364 = vlaneseq
    %v365 = vshrl.u32 %v364, 7
    %v366 = vsub.s32 1, %v365
    %v367 = vrot.slane %v358, %v366
    %v370 = vsub.f32 %v332, %v363
    %v371 = vsub.f32 %v333, %v367
    %v372 = vmul.f32 %v370, 1.442695
    %v373 = vpow.pop %v372
    %v374 = vmul.f32 %v371, 1.442695
    %v375 = vpow.pop %v374
    %378 = vset.pattern.permute.xlu0 0
    %379 = vperm.xlu0 %378, %v373
    %v380 = vpop.permute.xlu0 %379
    %381 = vset.pattern.permute.xlu0 0
    %382 = vperm.xlu0 %381, %v375
    %v383 = vpop.permute.xlu0 %382
    %v384 = vlaneseq
    %v385 = vshrl.u32 %v384, 7
    %v386 = vsub.s32 %v343, %v385
    %v387 = vrot.slane %v380, %v386
    %v388 = vlaneseq
    %v389 = vshrl.u32 %v388, 7
    %v390 = vsub.s32 %v343, %v389
    %v391 = vrot.slane %v383, %v390
    %v392 = vsel %vm352, %v391, %v387
    %v394 = vsel %vm355, %v392, 0.0
    %395 = vadd.xlane.f32.xlu0 %v394
    %v396 = vpop.xlane.xlu0 %395
    %v397 = vrcp.pop %v396
    %v399 = vlaneseq
    %v400 = vshrl.u32 %v399, 7
    %v401 = vsub.s32 0, %v400
    %v402 = vrot.slane %v397, %v401
    %v403 = vlaneseq
    %v404 = vshrl.u32 %v403, 7
    %v405 = vsub.s32 1, %v404
    %v406 = vrot.slane %v397, %v405
    %v409 = vmul.f32 %v373, %v402
    %v410 = vmul.f32 %v375, %v406
    %413 = vset.pattern.permute.xlu0 0
    %414 = vperm.xlu0 %413, %v409
    %v415 = vpop.permute.xlu0 %414
    %416 = vset.pattern.permute.xlu0 0
    %417 = vperm.xlu0 %416, %v410
    %v418 = vpop.permute.xlu0 %417
    %v419 = vlaneseq
    %v420 = vshrl.u32 %v419, 7
    %v421 = vsub.s32 %v343, %v420
    %v422 = vrot.slane %v415, %v421
    %v423 = vlaneseq
    %v424 = vshrl.u32 %v423, 7
    %v425 = vsub.s32 %v343, %v424
    %v426 = vrot.slane %v418, %v425
    %v427 = vsel %vm352, %v426, %v422
    %vm429 = vcmask 64512
    %v430 = vsel %vm429, %v427, 0.0
    %431 = vst [vmem:[#allocation12] sm:$0x3] %v430
    %v434 = vmul.f32 %v245, %v380
    %v435 = vmul.f32 %v246, %v383
    %v436 = vsel %vm129, %v434, 0.0
    %v437 = vrot.slane %v436, 4
    %v438 = vadd.f32 %v436, %v437
    %v439 = vrot.slane %v438, 2
    %v440 = vadd.f32 %v438, %v439
    %v441 = vrot.slane %v440, 1
    %v442 = vadd.f32 %v440, %v441
    %v443 = vsel %vm129, %v435, 0.0
    %v444 = vrot.slane %v443, 4
    %v445 = vadd.f32 %v443, %v444
    %v446 = vrot.slane %v445, 2
    %v447 = vadd.f32 %v445, %v446
    %v448 = vrot.slane %v447, 1
    %v449 = vadd.f32 %v447, %v448
    %v450 = vpack.c.bf16 %v442, %v442
    %v451 = vpack.c.bf16 %v449, %v449
    %v452 = vld [vmem:[#allocation10] sm:$0xf]
    %v453 = vld [vmem:[#allocation10 + $0x4] sm:$0xf]
    %v454 = vld [vmem:[#allocation10 + $0x8] sm:$0xf]
    %v455 = vld [vmem:[#allocation10 + $0xc] sm:$0xf]
    %v458 = vunpack.c.l.b16 %v450
    %v459 = vunpack.c.l.b16 %v451
    %v460 = vsel %vm352, %v459, %v458
    %v461 = vpack.c.b16 %v460, %v460
    %v466 = vunpack.c.l.b16 %v452
    %v467 = vunpack.c.l.b16 %v453
    %v468 = vunpack.c.l.b16 %v454
    %v469 = vunpack.c.l.b16 %v455
    %v470 = vpack.c.b16 %v467, %v466
    %v471 = vpack.c.b16 %v469, %v468
    %v475 = vsel %vm129, %v461, 0
    %477 = vmatprep.subr.bf16.mxu0 0
    %478 = vmatpush1.bf16.msra.mxu0 %v470
    %479 = vmatprep.subr.bf16.mxu0 0
    %480 = vmatpush1.bf16.msra.mxu0 %v471
    %481 = vmatprep.subr.bf16.mxu0 0
    %482 = vmatpush1.bf16.msra.mxu0 0
    %483 = vmatprep.subr.bf16.mxu0 0
    %484 = vmatpush1.bf16.msra.mxu0 0
    %485 = vmatprep.subr.bf16.mxu0 0
    %486 = vmatpush1.bf16.msra.mxu0 0
    %487 = vmatprep.subr.bf16.mxu0 0
    %488 = vmatpush1.bf16.msra.mxu0 0
    %489 = vmatprep.subr.bf16.mxu0 0
    %490 = vmatpush1.bf16.msra.mxu0 0
    %491 = vmatprep.subr.bf16.mxu0 0
    %492 = vmatpush1.bf16.msra.mxu0 0
    %493 = vmatprep.subr.bf16.mxu0 0
    %494 = vmatpush1.bf16.msra.mxu0 0
    %495 = vmatprep.subr.bf16.mxu0 0
    %496 = vmatpush1.bf16.msra.mxu0 0
    %497 = vmatprep.subr.bf16.mxu0 0
    %498 = vmatpush1.bf16.msra.mxu0 0
    %499 = vmatprep.subr.bf16.mxu0 0
    %500 = vmatpush1.bf16.msra.mxu0 0
    %501 = vmatprep.subr.bf16.mxu0 0
    %502 = vmatpush1.bf16.msra.mxu0 0
    %503 = vmatprep.subr.bf16.mxu0 0
    %504 = vmatpush1.bf16.msra.mxu0 0
    %505 = vmatprep.subr.bf16.mxu0 0
    %506 = vmatpush1.bf16.msra.mxu0 0
    %507 = vmatprep.subr.bf16.mxu0 0
    %508 = vmatpush1.bf16.msra.mxu0 0
    %509 = vmatprep.mubr.bf16.mxu0 0
    %510 = vmatmul.mubr.bf16.gmra.mrb[0].mxu0 %v475
    %v511 = vpop.f32.mrb[0].mxu0
    %v512 = vadd.f32 0.0, %v511
    %v513 = vpop.f32.mrb[0].mxu0
    %v514 = vpop.f32.mrb[0].mxu0
    %v515 = vpop.f32.mrb[0].mxu0
    %516 = vdwg.mxu0
    %v517 = vmul.f32 %v512, %v397
    %v518 = vld [vmem:[%s8] sm:$0x1]
    %v520 = vlaneseq
    %v521 = vshrl.u32 %v520, 7
    %v522 = vsub.s32 0, %v521
    %v523 = vrot.slane %v518, %v522
    %v525 = vadd.f32 %v517, %v523
    %526 = vst [vmem:[#allocation11] sm:$0x3] %v525
    // Predicated region
    $region62: #{tpu_custom_call.1} parent=1 // pred_check
      _
    $region63: #{tpu_custom_call.1} parent=1 // pred_check_branch
      %528 = sbr.rel (0) target = $region65
    $region64: #{tpu_custom_call.1} parent=1 // pred_region
      %s530 = ssub.s32 32, 32
      %531 = vsyncadd [#allocation4], %s530
      %s533 = sshll.u32 [#allocation11], 4
      %s534 = int_to_ptr.vmem [resolvable:$true] %s533
      %536 = dma.vmem_to_hbm [thread:$0]  %s534, 32, %s10, [#allocation4]
    $region65: #{tpu_custom_call.1} parent=1 // pred_fallthru
      _
    // Predicated region
    $region66: #{tpu_custom_call.1} parent=1 // pred_check
      _
    $region67: #{tpu_custom_call.1} parent=1 // pred_check_branch
      %538 = sbr.rel (0) target = $region69
    $region68: #{tpu_custom_call.1} parent=1 // pred_region
      %s540 = ssub.s32 32, 32
      %541 = vsyncadd [#allocation13], %s540
      %s543 = sshll.u32 [#allocation12], 4
      %s544 = int_to_ptr.vmem [resolvable:$true] %s543
      %546 = dma.vmem_to_hbm [thread:$0]  %s544, 32, %s11, [#allocation13]
    $region69: #{tpu_custom_call.1} parent=1 // pred_fallthru
      _
    // Predicated region
    $region70: #{tpu_custom_call.1} parent=1 // pred_check
      _
    $region71: #{tpu_custom_call.1} parent=1 // pred_check_branch
      %548 = sbr.rel (0) target = $region73
    $region72: #{tpu_custom_call.1} parent=1 // pred_region
      %549 = dma.done [#allocation4], 32
    $region73: #{tpu_custom_call.1} parent=1 // pred_fallthru
      _
    // Predicated region
    $region74: #{tpu_custom_call.1} parent=1 // pred_check
      _
    $region75: #{tpu_custom_call.1} parent=1 // pred_check_branch
      %551 = sbr.rel (0) target = $region77
    $region76: #{tpu_custom_call.1} parent=1 // pred_region
      %552 = dma.done [#allocation13], 32
    $region77: #{tpu_custom_call.1} parent=1 // pred_fallthru
      _
    %553 = vsyncpa [#allocation3], 1
    %554 = vsyncpa [#allocation6], 1
    %555 = vsyncpa [#allocation9], 1
    %556 = vsyncpa [#allocation4], 1
    %557 = vsyncpa [#allocation13], 1

// kernel: tpu_custom_call.1
$region0: #{tpu_custom_call.1}
  #allocation0 [shape = 'u32[]', space=smem, size = 0x4, offset = 0x4, fixed_abs, tag = 'smem constant byte address 0x4 - core index']
  #allocation1 [shape = 'u32[144,128]{1,0:T(1,128)}', space=vmem, size = 0x12000, scoped, tag = 'internal scratch']
  %s0 = inlined_call_operand.hbm [shape: f32[2,32], index: 0, kind: input, shape index: {}]
  %s1 = inlined_call_operand.hbm [shape: f32[2,8,32], index: 1, kind: input, shape index: {}]
  %s2 = inlined_call_operand.vmem [shape: f32[2,8], index: 2, kind: input, shape index: {}]
  %s3 = inlined_call_operand.hbm [shape: bf16[32,32], index: 3, kind: input, shape index: {}]
  %s4 = inlined_call_operand.hbm [shape: f32[1,32], index: 4, kind: input, shape index: {}]
  %s5 = inlined_call_operand.vmem [shape: bf16[32,32], index: 5, kind: input, shape index: {}]
  %s6 = inlined_call_operand.vmem [shape: f32[1,32], index: 6, kind: input, shape index: {}]
  %s7 = inlined_call_operand.hbm [shape: bf16[32,128], index: 7, kind: input, shape index: {}]
  %s8 = inlined_call_operand.vmem [shape: f32[1,128], index: 8, kind: input, shape index: {}]
  %s9 = inlined_call_operand.vmem [shape: f32[1,8], index: 9, kind: input, shape index: {}]
  %s10 = inlined_call_operand.hbm [shape: f32[2,128], index: 10, kind: output, shape index: {0}]
  %s11 = inlined_call_operand.hbm [shape: f32[2,128], index: 11, kind: output, shape index: {1}]
  %12 = xla_tuple %s10, %s11
  %s13 = sld [smem:[#allocation0]]
  $region78: #{tpu_custom_call.1} parent=0
    _
  %s15 = ssub.s32 1, %s13
  %s16 = scalar_select 0, %s15, %s13
  $region1: #{tpu_custom_call.1} parent=0
    #allocation2 [shape = 'u8[1024]{0}', space=vmem, size = 0x400, scoped, tag = 'input window, operand 0, single buffered']
    #allocation3 [shape = 's32[1]{0}', space=sflag, size = 0x4, scoped, tag = 'scoped memory for tpu_custom_call.1']
    #allocation4 [shape = 's32[1]{0}', space=sflag, size = 0x4, scoped, tag = 'scoped memory for tpu_custom_call.1']
    #allocation5 [shape = 'u8[8192]{0}', space=vmem, size = 0x2000, scoped, tag = 'input window, operand 1, single buffered']
    #allocation6 [shape = 's32[1]{0}', space=sflag, size = 0x4, scoped, tag = 'scoped memory for tpu_custom_call.1']
    #allocation7 [shape = 'u8[8192]{0}', space=vmem, size = 0x2000, scoped, tag = 'input window, operand 3, single buffered']
    #allocation8 [shape = 'u8[512]{0}', space=vmem, size = 0x400, scoped, tag = 'input window, operand 4, single buffered']
    #allocation9 [shape = 's32[1]{0}', space=sflag, size = 0x4, scoped, tag = 'scoped memory for tpu_custom_call.1']
    #allocation10 [shape = 'u8[8192]{0}', space=vmem, size = 0x2000, scoped, tag = 'input window, operand 7, single buffered']
    #allocation11 [shape = 'u8[1024]{0}', space=vmem, size = 0x400, scoped, tag = 'output window, operand 0, single buffered']
    #allocation12 [shape = 'u8[1024]{0}', space=vmem, size = 0x400, scoped, tag = 'output window, operand 1, single buffered']
    #allocation13 [shape = 's32[1]{0}', space=sflag, size = 0x4, scoped, tag = 'scoped memory for tpu_custom_call.1']
    %17 = vsyncpa [#allocation3], 0
    %18 = vsyncpa [#allocation6], 0
    %19 = vsyncpa [#allocation9], 0
    %20 = vsyncpa [#allocation4], 0
    %21 = vsyncpa [#allocation13], 0
    // Predicated region
    $region2: #{tpu_custom_call.1} parent=1 // pred_check
      _
    $region3: #{tpu_custom_call.1} parent=1 // pred_check_branch
      %23 = sbr.rel (0) target = $region5
    $region4: #{tpu_custom_call.1} parent=1 // pred_region
      %s25 = ssub.s32 32, 32
      %26 = vsyncadd [#allocation3], %s25
      %s28 = sshll.u32 [#allocation2], 4
      %s29 = int_to_ptr.vmem [resolvable:$true] %s28
      %31 = dma.hbm_to_vmem [thread:$0]  %s0, 32, %s29, [#allocation3]
    $region5: #{tpu_custom_call.1} parent=1 // pred_fallthru
      _
    // Predicated region
    $region6: #{tpu_custom_call.1} parent=1 // pred_check
      _
    $region7: #{tpu_custom_call.1} parent=1 // pred_check_branch
      %33 = sbr.rel (0) target = $region9
    $region8: #{tpu_custom_call.1} parent=1 // pred_region
      %s35 = ssub.s32 256, 256
      %36 = vsyncadd [#allocation6], %s35
      %s37 = sshll.u32 [#allocation5], 4
      %s38 = int_to_ptr.vmem [resolvable:$true] %s37
      %43 = dma.hbm_to_vmem [thread:$0]  %s1, 256, %s38, [#allocation6], 128, 128, 8
    $region9: #{tpu_custom_call.1} parent=1 // pred_fallthru
      _
    // Predicated region
    $region10: #{tpu_custom_call.1} parent=1 // pred_check
      _
    $region11: #{tpu_custom_call.1} parent=1 // pred_check_branch
      %45 = sbr.rel (0) target = $region13
    $region12: #{tpu_custom_call.1} parent=1 // pred_region
      _
    $region13: #{tpu_custom_call.1} parent=1 // pred_fallthru
      _
    // Predicated region
    $region14: #{tpu_custom_call.1} parent=1 // pred_check
      _
    $region15: #{tpu_custom_call.1} parent=1 // pred_check_branch
      %47 = sbr.rel (0) target = $region17
    $region16: #{tpu_custom_call.1} parent=1 // pred_region
      %s49 = ssub.s32 256, 256
      %50 = vsyncadd [#allocation6], %s49
      %s51 = sshll.u32 [#allocation7], 4
      %s52 = int_to_ptr.vmem [resolvable:$true] %s51
      %57 = dma.hbm_to_vmem [thread:$0]  %s3, 256, %s52, [#allocation6], 64, 64, 4
    $region17: #{tpu_custom_call.1} parent=1 // pred_fallthru
      _
    // Predicated region
    $region18: #{tpu_custom_call.1} parent=1 // pred_check
      _
    $region19: #{tpu_custom_call.1} parent=1 // pred_check_branch
      %59 = sbr.rel (0) target = $region21
    $region20: #{tpu_custom_call.1} parent=1 // pred_region
      %s61 = ssub.s32 16, 16
      %62 = vsyncadd [#allocation9], %s61
      %s64 = sshll.u32 [#allocation8], 4
      %s65 = int_to_ptr.vmem [resolvable:$true] %s64
      %67 = dma.hbm_to_vmem [thread:$0]  %s4, 16, %s65, [#allocation9]
    $region21: #{tpu_custom_call.1} parent=1 // pred_fallthru
      _
    // Predicated region
    $region22: #{tpu_custom_call.1} parent=1 // pred_check
      _
    $region23: #{tpu_custom_call.1} parent=1 // pred_check_branch
      %69 = sbr.rel (0) target = $region25
    $region24: #{tpu_custom_call.1} parent=1 // pred_region
      _
    $region25: #{tpu_custom_call.1} parent=1 // pred_fallthru
      _
    // Predicated region
    $region26: #{tpu_custom_call.1} parent=1 // pred_check
      _
    $region27: #{tpu_custom_call.1} parent=1 // pred_check_branch
      %71 = sbr.rel (0) target = $region29
    $region28: #{tpu_custom_call.1} parent=1 // pred_region
      _
    $region29: #{tpu_custom_call.1} parent=1 // pred_fallthru
      _
    // Predicated region
    $region30: #{tpu_custom_call.1} parent=1 // pred_check
      _
    $region31: #{tpu_custom_call.1} parent=1 // pred_check_branch
      %73 = sbr.rel (0) target = $region33
    $region32: #{tpu_custom_call.1} parent=1 // pred_region
      %s75 = ssub.s32 256, 256
      %76 = vsyncadd [#allocation9], %s75
      %s77 = sshll.u32 [#allocation10], 4
      %s78 = int_to_ptr.vmem [resolvable:$true] %s77
      %83 = dma.hbm_to_vmem [thread:$0]  %s7, 256, %s78, [#allocation9], 64, 64, 4
    $region33: #{tpu_custom_call.1} parent=1 // pred_fallthru
      _
    // Predicated region
    $region34: #{tpu_custom_call.1} parent=1 // pred_check
      _
    $region35: #{tpu_custom_call.1} parent=1 // pred_check_branch
      %85 = sbr.rel (0) target = $region37
    $region36: #{tpu_custom_call.1} parent=1 // pred_region
      _
    $region37: #{tpu_custom_call.1} parent=1 // pred_fallthru
      _
    // Predicated region
    $region38: #{tpu_custom_call.1} parent=1 // pred_check
      _
    $region39: #{tpu_custom_call.1} parent=1 // pred_check_branch
      %87 = sbr.rel (0) target = $region41
    $region40: #{tpu_custom_call.1} parent=1 // pred_region
      _
    $region41: #{tpu_custom_call.1} parent=1 // pred_fallthru
      _
    // Predicated region
    $region42: #{tpu_custom_call.1} parent=1 // pred_check
      _
    $region43: #{tpu_custom_call.1} parent=1 // pred_check_branch
      %89 = sbr.rel (0) target = $region45
    $region44: #{tpu_custom_call.1} parent=1 // pred_region
      %90 = dma.done [#allocation3], 32
    $region45: #{tpu_custom_call.1} parent=1 // pred_fallthru
      _
    // Predicated region
    $region46: #{tpu_custom_call.1} parent=1 // pred_check
      _
    $region47: #{tpu_custom_call.1} parent=1 // pred_check_branch
      %92 = sbr.rel (0) target = $region49
    $region48: #{tpu_custom_call.1} parent=1 // pred_region
      %93 = dma.done [#allocation6], 256
    $region49: #{tpu_custom_call.1} parent=1 // pred_fallthru
      _
    // Predicated region
    $region50: #{tpu_custom_call.1} parent=1 // pred_check
      _
    $region51: #{tpu_custom_call.1} parent=1 // pred_check_branch
      %95 = sbr.rel (0) target = $region53
    $region52: #{tpu_custom_call.1} parent=1 // pred_region
      %96 = dma.done [#allocation6], 256
    $region53: #{tpu_custom_call.1} parent=1 // pred_fallthru
      _
    // Predicated region
    $region54: #{tpu_custom_call.1} parent=1 // pred_check
      _
    $region55: #{tpu_custom_call.1} parent=1 // pred_check_branch
      %98 = sbr.rel (0) target = $region57
    $region56: #{tpu_custom_call.1} parent=1 // pred_region
      %99 = dma.done [#allocation9], 16
    $region57: #{tpu_custom_call.1} parent=1 // pred_fallthru
      _
    // Predicated region
    $region58: #{tpu_custom_call.1} parent=1 // pred_check
      _
    $region59: #{tpu_custom_call.1} parent=1 // pred_check_branch
      %101 = sbr.rel (0) target = $region61
    $region60: #{tpu_custom_call.1} parent=1 // pred_region
      %102 = dma.done [#allocation9], 256
    $region61: #{tpu_custom_call.1} parent=1 // pred_fallthru
      _
    %v104 = vld [vmem:[#allocation2] sm:$0x3]
    %v105 = vpack.c.bf16 %v104, %v104
    %v106 = vld [vmem:[#allocation7] sm:$0xf]
    %v107 = vld [vmem:[#allocation7 + $0x4] sm:$0xf]
    %v108 = vld [vmem:[#allocation7 + $0x8] sm:$0xf]
    %v109 = vld [vmem:[#allocation7 + $0xc] sm:$0xf]
    %v110 = vld [vmem:[#allocation8] sm:$0x1]
    %v112 = vlaneseq
    %v113 = vshrl.u32 %v112, 7
    %v114 = vsub.s32 0, %v113
    %v115 = vrot.slane %v110, %v114
    %v121 = vunpack.c.l.b16 %v106
    %v122 = vunpack.c.l.b16 %v107
    %v123 = vunpack.c.l.b16 %v108
    %v124 = vunpack.c.l.b16 %v109
    %v125 = vpack.c.b16 %v122, %v121
    %v126 = vpack.c.b16 %v124, %v123
    %vm129 = vcmask 261120
    %v131 = vsel %vm129, %v105, 0
    %133 = vmatprep.subr.bf16.mxu0 0
    %134 = vmatpush1.bf16.msra.mxu0 %v125
    %135 = vmatprep.subr.bf16.mxu0 0
    %136 = vmatpush1.bf16.msra.mxu0 %v126
    %137 = vmatprep.subr.bf16.mxu0 0
    %138 = vmatpush1.bf16.msra.mxu0 0
    %139 = vmatprep.subr.bf16.mxu0 0
    %140 = vmatpush1.bf16.msra.mxu0 0
    %141 = vmatprep.subr.bf16.mxu0 0
    %142 = vmatpush1.bf16.msra.mxu0 0
    %143 = vmatprep.subr.bf16.mxu0 0
    %144 = vmatpush1.bf16.msra.mxu0 0
    %145 = vmatprep.subr.bf16.mxu0 0
    %146 = vmatpush1.bf16.msra.mxu0 0
    %147 = vmatprep.subr.bf16.mxu0 0
    %148 = vmatpush1.bf16.msra.mxu0 0
    %149 = vmatprep.subr.bf16.mxu0 0
    %150 = vmatpush1.bf16.msra.mxu0 0
    %151 = vmatprep.subr.bf16.mxu0 0
    %152 = vmatpush1.bf16.msra.mxu0 0
    %153 = vmatprep.subr.bf16.mxu0 0
    %154 = vmatpush1.bf16.msra.mxu0 0
    %155 = vmatprep.subr.bf16.mxu0 0
    %156 = vmatpush1.bf16.msra.mxu0 0
    %157 = vmatprep.subr.bf16.mxu0 0
    %158 = vmatpush1.bf16.msra.mxu0 0
    %159 = vmatprep.subr.bf16.mxu0 0
    %160 = vmatpush1.bf16.msra.mxu0 0
    %161 = vmatprep.subr.bf16.mxu0 0
    %162 = vmatpush1.bf16.msra.mxu0 0
    %163 = vmatprep.subr.bf16.mxu0 0
    %164 = vmatpush1.bf16.msra.mxu0 0
    %165 = vmatprep.mubr.bf16.mxu0 0
    %166 = vmatmul.mubr.bf16.gmra.mrb[0].mxu0 %v131
    %v167 = vpop.f32.mrb[0].mxu0
    %v168 = vadd.f32 %v115, %v167
    %v169 = vpop.f32.mrb[0].mxu0
    %v170 = vpop.f32.mrb[0].mxu0
    %v171 = vpop.f32.mrb[0].mxu0
    %172 = vdwg.mxu0
    %v173 = vpack.c.bf16 %v168, %v168
    %v174 = vld [vmem:[%s5] sm:$0xf]
    %v175 = vld [vmem:[%s5 + $0x4] sm:$0xf]
    %v176 = vld [vmem:[%s5 + $0x8] sm:$0xf]
    %v177 = vld [vmem:[%s5 + $0xc] sm:$0xf]
    %v182 = vunpack.c.l.b16 %v174
    %v183 = vunpack.c.l.b16 %v175
    %v184 = vunpack.c.l.b16 %v176
    %v185 = vunpack.c.l.b16 %v177
    %v186 = vpack.c.b16 %v183, %v182
    %v187 = vpack.c.b16 %v185, %v184
    %v191 = vsel %vm129, %v173, 0
    %193 = vmatprep.subr.bf16.mxu0 0
    %194 = vmatpush1.bf16.msra.mxu0 %v186
    %195 = vmatprep.subr.bf16.mxu0 0
    %196 = vmatpush1.bf16.msra.mxu0 %v187
    %197 = vmatprep.subr.bf16.mxu0 0
    %198 = vmatpush1.bf16.msra.mxu0 0
    %199 = vmatprep.subr.bf16.mxu0 0
    %200 = vmatpush1.bf16.msra.mxu0 0
    %201 = vmatprep.subr.bf16.mxu0 0
    %202 = vmatpush1.bf16.msra.mxu0 0
    %203 = vmatprep.subr.bf16.mxu0 0
    %204 = vmatpush1.bf16.msra.mxu0 0
    %205 = vmatprep.subr.bf16.mxu0 0
    %206 = vmatpush1.bf16.msra.mxu0 0
    %207 = vmatprep.subr.bf16.mxu0 0
    %208 = vmatpush1.bf16.msra.mxu0 0
    %209 = vmatprep.subr.bf16.mxu0 0
    %210 = vmatpush1.bf16.msra.mxu0 0
    %211 = vmatprep.subr.bf16.mxu0 0
    %212 = vmatpush1.bf16.msra.mxu0 0
    %213 = vmatprep.subr.bf16.mxu0 0
    %214 = vmatpush1.bf16.msra.mxu0 0
    %215 = vmatprep.subr.bf16.mxu0 0
    %216 = vmatpush1.bf16.msra.mxu0 0
    %217 = vmatprep.subr.bf16.mxu0 0
    %218 = vmatpush1.bf16.msra.mxu0 0
    %219 = vmatprep.subr.bf16.mxu0 0
    %220 = vmatpush1.bf16.msra.mxu0 0
    %221 = vmatprep.subr.bf16.mxu0 0
    %222 = vmatpush1.bf16.msra.mxu0 0
    %223 = vmatprep.subr.bf16.mxu0 0
    %224 = vmatpush1.bf16.msra.mxu0 0
    %225 = vmatprep.mubr.bf16.mxu0 0
    %226 = vmatmul.mubr.bf16.gmra.mrb[0].mxu0 %v191
    %v227 = vpop.f32.mrb[0].mxu0
    %v228 = vadd.f32 0.0, %v227
    %v229 = vpop.f32.mrb[0].mxu0
    %v230 = vpop.f32.mrb[0].mxu0
    %v231 = vpop.f32.mrb[0].mxu0
    %232 = vdwg.mxu0
    %v233 = vld [vmem:[%s6] sm:$0x1]
    %v235 = vlaneseq
    %v236 = vshrl.u32 %v235, 7
    %v237 = vsub.s32 0, %v236
    %v238 = vrot.slane %v233, %v237
    %v240 = vmul.f32 %v168, %v238
    %vm241 = vcmask 254976
    %v242 = vsel %vm241, %v240, 0.0
    %243 = vadd.xlane.f32.xlu0 %v242
    %v244 = vpop.xlane.xlu0 %243
    %v245 = vld [vmem:[#allocation5] sm:$0xff]
    %v246 = vld [vmem:[#allocation5 + $0x8] sm:$0xff]
    %v249 = vunpack.c.l.s4 1966171168
    %v250 = vunpack.c.0.s8 %v249
    %v251 = vlaneseq
    %v252 = vshrl.u32 %v251, 7
    %v253 = vsub.s32 %v250, %v252
    %v254 = vrot.slane %v228, %v253
    %v255 = vcombine.high %v254, %v254
    %v257 = vunpack.c.l.s4 1966171168
    %v258 = vunpack.c.0.s8 %v257
    %v259 = vlaneseq
    %v260 = vshrl.u32 %v259, 7
    %v261 = vsub.s32 %v258, %v260
    %v262 = vrot.slane %v254, %v261
    %v264 = vunpack.c.l.s4 1966171168
    %v265 = vunpack.c.0.s8 %v264
    %v266 = vlaneseq
    %v267 = vshrl.u32 %v266, 7
    %v268 = vsub.s32 %v265, %v267
    %v269 = vrot.slane %v255, %v268
    %v270 = vlaneseq
    %v271 = vshrl.u32 %v270, 7
    %v272 = vsub.s32 0, %v271
    %v273 = vrot.slane %v262, %v272
    %v274 = vlaneseq
    %v275 = vshrl.u32 %v274, 7
    %v276 = vsub.s32 0, %v275
    %v277 = vrot.slane %v269, %v276
    %v280 = vmul.f32 %v245, %v273
    %v281 = vmul.f32 %v246, %v277
    %v282 = vsel %vm129, %v280, 0.0
    %283 = vadd.xlane.f32.xlu0 %v282
    %v284 = vpop.xlane.xlu0 %283
    %v285 = vsel %vm129, %v281, 0.0
    %286 = vadd.xlane.f32.xlu0 %v285
    %v287 = vpop.xlane.xlu0 %286
    %v289 = vlaneseq
    %v290 = vshrl.u32 %v289, 7
    %v291 = vsub.s32 0, %v290
    %v292 = vrot.slane %v244, %v291
    %v293 = vlaneseq
    %v294 = vshrl.u32 %v293, 7
    %v295 = vsub.s32 1, %v294
    %v296 = vrot.slane %v244, %v295
    %v299 = vadd.f32 %v284, %v292
    %v300 = vadd.f32 %v287, %v296
    %v301 = vmul.f32 %v299, 0.17677669
    %v302 = vmul.f32 %v300, 0.17677669
    %v303 = vld [vmem:[%s2] sm:$0x3]
    %v304 = vld [vmem:[%s9] sm:$0x1]
    %v305 = vsub.f32 0.0, %v304
    %v307 = vlaneseq
    %v308 = vshrl.u32 %v307, 7
    %v309 = vsub.s32 0, %v308
    %v310 = vrot.slane %v305, %v309
    %v312 = vmul.f32 %v310, %v303
    %v313 = vmul.f32 %v312, 1.442695
    %v314 = vpow.pop %v313
    %v316 = vlaneseq
    %v317 = vshrl.u32 %v316, 7
    %v318 = vsub.s32 0, %v317
    %v319 = vrot.slane %v314, %v318
    %321 = vbcast.lane.b32.xlu0 %v319, 256
    %v322 = vpop.permute.xlu0 %321
    %v323 = vlaneseq
    %v324 = vshrl.u32 %v323, 7
    %v325 = vsub.s32 1, %v324
    %v326 = vrot.slane %v314, %v325
    %328 = vbcast.lane.b32.xlu0 %v326, 256
    %v329 = vpop.permute.xlu0 %328
    %v332 = vmul.f32 %v301, %v322
    %v333 = vmul.f32 %v302, %v329
    %336 = vset.pattern.permute.xlu0 0
    %337 = vperm.xlu0 %336, %v332
    %v338 = vpop.permute.xlu0 %337
    %339 = vset.pattern.permute.xlu0 0
    %340 = vperm.xlu0 %339, %v333
    %v341 = vpop.permute.xlu0 %340
    %v342 = vlaneseq
    %v343 = vand.u32 %v342, 127
    %v344 = vlaneseq
    %v345 = vshrl.u32 %v344, 7
    %v346 = vsub.s32 %v343, %v345
    %v347 = vrot.slane %v338, %v346
    %v348 = vlaneseq
    %v349 = vshrl.u32 %v348, 7
    %v350 = vsub.s32 %v343, %v349
    %v351 = vrot.slane %v341, %v350
    %vm352 = vcmask 1041409
    %v353 = vsel %vm352, %v351, %v347
    %vm355 = vcmask 58368
    %v356 = vsel %vm355, %v353, -inf
    %357 = vmax.xlane.f32.xlu0 %v356
    %v358 = vpop.xlane.xlu0 %357
    %v360 = vlaneseq
    %v361 = vshrl.u32 %v360, 7
    %v362 = vsub.s32 0, %v361
    %v363 = vrot.slane %v358, %v362
    %v364 = vlaneseq
    %v365 = vshrl.u32 %v364, 7
    %v366 = vsub.s32 1, %v365
    %v367 = vrot.slane %v358, %v366
    %v370 = vsub.f32 %v332, %v363
    %v371 = vsub.f32 %v333, %v367
    %v372 = vmul.f32 %v370, 1.442695
    %v373 = vpow.pop %v372
    %v374 = vmul.f32 %v371, 1.442695
    %v375 = vpow.pop %v374
    %378 = vset.pattern.permute.xlu0 0
    %379 = vperm.xlu0 %378, %v373
    %v380 = vpop.permute.xlu0 %379
    %381 = vset.pattern.permute.xlu0 0
    %382 = vperm.xlu0 %381, %v375
    %v383 = vpop.permute.xlu0 %382
    %v384 = vlaneseq
    %v385 = vshrl.u32 %v384, 7
    %v386 = vsub.s32 %v343, %v385
    %v387 = vrot.slane %v380, %v386
    %v388 = vlaneseq
    %v389 = vshrl.u32 %v388, 7
    %v390 = vsub.s32 %v343, %v389
    %v391 = vrot.slane %v383, %v390
    %v392 = vsel %vm352, %v391, %v387
    %v394 = vsel %vm355, %v392, 0.0
    %395 = vadd.xlane.f32.xlu0 %v394
    %v396 = vpop.xlane.xlu0 %395
    %v397 = vrcp.pop %v396
    %v399 = vlaneseq
    %v400 = vshrl.u32 %v399, 7
    %v401 = vsub.s32 0, %v400
    %v402 = vrot.slane %v397, %v401
    %v403 = vlaneseq
    %v404 = vshrl.u32 %v403, 7
    %v405 = vsub.s32 1, %v404
    %v406 = vrot.slane %v397, %v405
    %v409 = vmul.f32 %v373, %v402
    %v410 = vmul.f32 %v375, %v406
    %413 = vset.pattern.permute.xlu0 0
    %414 = vperm.xlu0 %413, %v409
    %v415 = vpop.permute.xlu0 %414
    %416 = vset.pattern.permute.xlu0 0
    %417 = vperm.xlu0 %416, %v410
    %v418 = vpop.permute.xlu0 %417
    %v419 = vlaneseq
    %v420 = vshrl.u32 %v419, 7
    %v421 = vsub.s32 %v343, %v420
    %v422 = vrot.slane %v415, %v421
    %v423 = vlaneseq
    %v424 = vshrl.u32 %v423, 7
    %v425 = vsub.s32 %v343, %v424
    %v426 = vrot.slane %v418, %v425
    %v427 = vsel %vm352, %v426, %v422
    %vm429 = vcmask 64512
    %v430 = vsel %vm429, %v427, 0.0
    %431 = vst [vmem:[#allocation12] sm:$0x3] %v430
    %v434 = vmul.f32 %v245, %v380
    %v435 = vmul.f32 %v246, %v383
    %v436 = vsel %vm129, %v434, 0.0
    %v437 = vrot.slane %v436, 4
    %v438 = vadd.f32 %v436, %v437
    %v439 = vrot.slane %v438, 2
    %v440 = vadd.f32 %v438, %v439
    %v441 = vrot.slane %v440, 1
    %v442 = vadd.f32 %v440, %v441
    %v443 = vsel %vm129, %v435, 0.0
    %v444 = vrot.slane %v443, 4
    %v445 = vadd.f32 %v443, %v444
    %v446 = vrot.slane %v445, 2
    %v447 = vadd.f32 %v445, %v446
    %v448 = vrot.slane %v447, 1
    %v449 = vadd.f32 %v447, %v448
    %v450 = vpack.c.bf16 %v442, %v442
    %v451 = vpack.c.bf16 %v449, %v449
    %v452 = vld [vmem:[#allocation10] sm:$0xf]
    %v453 = vld [vmem:[#allocation10 + $0x4] sm:$0xf]
    %v454 = vld [vmem:[#allocation10 + $0x8] sm:$0xf]
    %v455 = vld [vmem:[#allocation10 + $0xc] sm:$0xf]
    %v458 = vunpack.c.l.b16 %v450
    %v459 = vunpack.c.l.b16 %v451
    %v460 = vsel %vm352, %v459, %v458
    %v461 = vpack.c.b16 %v460, %v460
    %v466 = vunpack.c.l.b16 %v452
    %v467 = vunpack.c.l.b16 %v453
    %v468 = vunpack.c.l.b16 %v454
    %v469 = vunpack.c.l.b16 %v455
    %v470 = vpack.c.b16 %v467, %v466
    %v471 = vpack.c.b16 %v469, %v468
    %v475 = vsel %vm129, %v461, 0
    %477 = vmatprep.subr.bf16.mxu0 0
    %478 = vmatpush1.bf16.msra.mxu0 %v470
    %479 = vmatprep.subr.bf16.mxu0 0
    %480 = vmatpush1.bf16.msra.mxu0 %v471
    %481 = vmatprep.subr.bf16.mxu0 0
    %482 = vmatpush1.bf16.msra.mxu0 0
    %483 = vmatprep.subr.bf16.mxu0 0
    %484 = vmatpush1.bf16.msra.mxu0 0
    %485 = vmatprep.subr.bf16.mxu0 0
    %486 = vmatpush1.bf16.msra.mxu0 0
    %487 = vmatprep.subr.bf16.mxu0 0
    %488 = vmatpush1.bf16.msra.mxu0 0
    %489 = vmatprep.subr.bf16.mxu0 0
    %490 = vmatpush1.bf16.msra.mxu0 0
    %491 = vmatprep.subr.bf16.mxu0 0
    %492 = vmatpush1.bf16.msra.mxu0 0
    %493 = vmatprep.subr.bf16.mxu0 0
    %494 = vmatpush1.bf16.msra.mxu0 0
    %495 = vmatprep.subr.bf16.mxu0 0
    %496 = vmatpush1.bf16.msra.mxu0 0
    %497 = vmatprep.subr.bf16.mxu0 0
    %498 = vmatpush1.bf16.msra.mxu0 0
    %499 = vmatprep.subr.bf16.mxu0 0
    %500 = vmatpush1.bf16.msra.mxu0 0
    %501 = vmatprep.subr.bf16.mxu0 0
    %502 = vmatpush1.bf16.msra.mxu0 0
    %503 = vmatprep.subr.bf16.mxu0 0
    %504 = vmatpush1.bf16.msra.mxu0 0
    %505 = vmatprep.subr.bf16.mxu0 0
    %506 = vmatpush1.bf16.msra.mxu0 0
    %507 = vmatprep.subr.bf16.mxu0 0
    %508 = vmatpush1.bf16.msra.mxu0 0
    %509 = vmatprep.mubr.bf16.mxu0 0
    %510 = vmatmul.mubr.bf16.gmra.mrb[0].mxu0 %v475
    %v511 = vpop.f32.mrb[0].mxu0
    %v512 = vadd.f32 0.0, %v511
    %v513 = vpop.f32.mrb[0].mxu0
    %v514 = vpop.f32.mrb[0].mxu0
    %v515 = vpop.f32.mrb[0].mxu0
    %516 = vdwg.mxu0
    %v517 = vmul.f32 %v512, %v397
    %v518 = vld [vmem:[%s8] sm:$0x1]
    %v520 = vlaneseq
    %v521 = vshrl.u32 %v520, 7
    %v522 = vsub.s32 0, %v521
    %v523 = vrot.slane %v518, %v522
    %v525 = vadd.f32 %v517, %v523
    %526 = vst [vmem:[#allocation11] sm:$0x3] %v525
    // Predicated region
    $region62: #{tpu_custom_call.1} parent=1 // pred_check
      _
    $region63: #{tpu_custom_call.1} parent=1 // pred_check_branch
      %528 = sbr.rel (0) target = $region65
    $region64: #{tpu_custom_call.1} parent=1 // pred_region
      %s530 = ssub.s32 32, 32
      %531 = vsyncadd [#allocation4], %s530
      %s533 = sshll.u32 [#allocation11], 4
      %s534 = int_to_ptr.vmem [resolvable:$true] %s533
      %536 = dma.vmem_to_hbm [thread:$0]  %s534, 32, %s10, [#allocation4]
    $region65: #{tpu_custom_call.1} parent=1 // pred_fallthru
      _
    // Predicated region
    $region66: #{tpu_custom_call.1} parent=1 // pred_check
      _
    $region67: #{tpu_custom_call.1} parent=1 // pred_check_branch
      %538 = sbr.rel (0) target = $region69
    $region68: #{tpu_custom_call.1} parent=1 // pred_region
      %s540 = ssub.s32 32, 32
      %541 = vsyncadd [#allocation13], %s540
      %s543 = sshll.u32 [#allocation12], 4
      %s544 = int_to_ptr.vmem [resolvable:$true] %s543
      %546 = dma.vmem_to_hbm [thread:$0]  %s544, 32, %s11, [#allocation13]
    $region69: #{tpu_custom_call.1} parent=1 // pred_fallthru
      _
    // Predicated region
    $region70: #{tpu_custom_call.1} parent=1 // pred_check
      _
    $region71: #{tpu_custom_call.1} parent=1 // pred_check_branch
      %548 = sbr.rel (0) target = $region73
    $region72: #{tpu_custom_call.1} parent=1 // pred_region
      %549 = dma.done [#allocation4], 32
    $region73: #{tpu_custom_call.1} parent=1 // pred_fallthru
      _
    // Predicated region
    $region74: #{tpu_custom_call.1} parent=1 // pred_check
      _
    $region75: #{tpu_custom_call.1} parent=1 // pred_check_branch
      %551 = sbr.rel (0) target = $region77
    $region76: #{tpu_custom_call.1} parent=1 // pred_region
      %552 = dma.done [#allocation13], 32
    $region77: #{tpu_custom_call.1} parent=1 // pred_fallthru
      _
    %553 = vsyncpa [#allocation3], 1
    %554 = vsyncpa [#allocation6], 1
    %555 = vsyncpa [#allocation9], 1
    %556 = vsyncpa [#allocation4], 1
    %557 = vsyncpa [#allocation13], 1

</llo_original>
